<compile_context>
chip_gen: v6e
topology: v6e:2x2x1
jax: 0.10.0
libtpu: 0.0.40
codegen_flags: <defaults>
</compile_context>

<pallas_src>
import jax
import jax.numpy as jnp
import numpy as np
from jax.experimental import pallas as pl
from jax.experimental.pallas import tpu as pltpu

# ----------------------------- model config ---------------------------------
NUM_LAYER = 5
EMB_DIM = 32          # emb_dim (300 in the original, shrunk for the test)
FEAT_DIM = 32         # feat_dim (256 in the original)
N_NODES = 16
N_EDGES = 20
N_GRAPHS = 2
NUM_ATOM_TYPE = 119
NUM_CHIRALITY_TAG = 3
NUM_BOND_TYPE = 5
NUM_BOND_DIRECTION = 3
BN_EPS = 1e-5

E_TOT = N_EDGES + N_NODES            # edges incl. self loops (36)

# ----------------------------- padded slab layout ----------------------------
DP = 128                             # lane-dense feature width
NPAD = 128                           # padded node count (full lane width)
EPAD = 128                           # padded edge count (full lane width)
GP = 8                               # padded graph count (one sublane block)
OUT_ROWS = 2 * GP                    # rows 0:GP -> feat, rows GP:2GP -> out
assert NPAD >= N_NODES and EPAD >= E_TOT and GP >= N_GRAPHS
assert DP >= 2 * EMB_DIM and DP >= FEAT_DIM

# block 0: structure + initial node features (400 rows)
OFF_S = 0                            # [EPAD, NPAD] one-hot(src)
OFF_A = OFF_S + EPAD                 # [NPAD, EPAD] one-hot(tgt) (scatter-add)
OFF_POOL = OFF_A + NPAD              # [GP, NPAD]  mean-pool rows (16 reserved)
OFF_H0 = OFF_POOL + 16               # [NPAD, DP]  initial node features
STRUCT_ROWS = OFF_H0 + NPAD          # 400

# per-layer blocks (400 rows each): W1 | W2 | (b1,b2,gamma,beta) | ee
LAYER_BASE = STRUCT_ROWS             # 400
L_W1 = 0
L_W2 = DP
L_PAR = 2 * DP                       # rows: 0=b1, 1=b2, 2=gamma, 3=beta (16 reserved)
L_EE = 2 * DP + 16
LSTRIDE = L_EE + EPAD                # 400

# head block (400 rows): Wf | Wo1 | Wo2 | (bf, bo1, bo2)
HEAD_BASE = LAYER_BASE + NUM_LAYER * LSTRIDE     # 2400
H_WF = 0
H_WO1 = DP
H_WO2 = 2 * DP
H_PAR = 3 * DP                       # rows: 0=bf, 1=bo1, 2=bo2 (16 reserved)
TOTAL_ROWS = HEAD_BASE + H_PAR + 16  # 2800

# every slice start is a multiple of 16 (bf16 (16,128) tile boundary)
for _off in (OFF_S, OFF_A, OFF_POOL, OFF_H0, LAYER_BASE, L_W1, L_W2, L_PAR,
             L_EE, LSTRIDE, HEAD_BASE, H_WF, H_WO1, H_WO2, H_PAR, TOTAL_ROWS):
    assert _off % 16 == 0


# ----------------------------- Pallas kernel --------------------------------
def ginet_kernel(slab_ref, out_ref):
    f32, bf16 = jnp.float32, jnp.bfloat16

    # graph structure (exact 0/1 and 1/count values stored bf16); 128-lane slices
    S = slab_ref[OFF_S:OFF_S + EPAD, :]            # [EPAD, NPAD] one-hot(src)
    A = slab_ref[OFF_A:OFF_A + NPAD, :]            # [NPAD, EPAD] one-hot(tgt)
    Pp = slab_ref[OFF_POOL:OFF_POOL + GP, :]       # [GP, NPAD]   mean-pool rows
    h0 = slab_ref[OFF_H0:OFF_H0 + NPAD, :].astype(f32)   # [NPAD, DP]

    inv_n = 1.0 / N_NODES

    def gine_layer(h, base):
        """One GINEConv + training-mode BN statistics.

        Returns (h2, mean, scale, beta) so callers can either materialize the
        full BN over node rows (inner layers) or fuse it into the pool (last).
        """
        W1 = slab_ref[pl.ds(base + L_W1, DP), :]                  # bf16 [DP, DP]
        W2 = slab_ref[pl.ds(base + L_W2, DP), :]                  # bf16 [DP, DP]
        par = slab_ref[pl.ds(base + L_PAR, 16), :].astype(f32)    # b1|b2|gamma|beta
        b1, b2 = par[0:1, :], par[1:2, :]
        gamma, beta = par[2:3, :], par[3:4, :]
        ee = slab_ref[pl.ds(base + L_EE, EPAD), :].astype(f32)    # [EPAD, DP]

        # GINEConv.propagate: message = relu(x_j + edge_emb), aggregate = add
        # (gather / scatter-add as one-hot matmuls on the MXU)
        x_j = jnp.dot(S, h.astype(bf16), preferred_element_type=f32)     # [EPAD, DP]
        msg = jnp.maximum(x_j + ee, 0.0)
        aggr = jnp.dot(A, msg.astype(bf16), preferred_element_type=f32)  # [NPAD, DP]

        # GINEConv.update: Linear(D,2D) -> ReLU -> Linear(2D,D)
        h1 = jnp.maximum(
            jnp.dot(aggr.astype(bf16), W1, preferred_element_type=f32) + b1, 0.0)
        h2 = jnp.dot(h1.astype(bf16), W2, preferred_element_type=f32) + b2   # [NPAD, DP]

        # BatchNorm1d batch stats in f32 via masked sublane reductions
        # (VPU/XLU only: no MXU push on the stats path, no bf16 cancellation).
        rows = jax.lax.broadcasted_iota(jnp.int32, (NPAD, DP), 0)
        h2m = jnp.where(rows < N_NODES, h2, 0.0)
        mean = jnp.sum(h2m, axis=0, keepdims=True) * inv_n                # [1, DP]
        ex2 = jnp.sum(h2m * h2, axis=0, keepdims=True) * inv_n            # [1, DP]
        var = jnp.maximum(ex2 - mean * mean, 0.0)
        scale = jax.lax.rsqrt(var + BN_EPS) * gamma
        return h2, mean, scale, beta

    def body(l, h):
        base = pl.multiple_of(LAYER_BASE + l * LSTRIDE, 16)
        h2, mean, scale, beta = gine_layer(h, base)
        hbn = (h2 - mean) * scale + beta
        return jnp.maximum(hbn, 0.0)       # dropout(p=0) identity; ReLU (not last layer)

    # layers 0 .. NUM_LAYER-2: rolled loop bounds live ranges (no 5x-unroll spill)
    h = jax.lax.fori_loop(0, NUM_LAYER - 1, body, h0)

    # last layer: no ReLU, BN fused into the mean pool (pool rows sum to 1 and
    # the BN affine is per-feature):  pool(BN(h2)) = (Pp@h2 - mean)*scale + beta
    h2, mean, scale, beta = gine_layer(h, LAYER_BASE + (NUM_LAYER - 1) * LSTRIDE)
    ph2 = jnp.dot(Pp, h2.astype(bf16), preferred_element_type=f32)        # [GP, DP]
    pooled = (ph2 - mean) * scale + beta

    # head: feat_lin -> (Linear, ReLU, Linear)
    Wf = slab_ref[HEAD_BASE + H_WF:HEAD_BASE + H_WF + DP, :]
    Wo1 = slab_ref[HEAD_BASE + H_WO1:HEAD_BASE + H_WO1 + DP, :]
    Wo2 = slab_ref[HEAD_BASE + H_WO2:HEAD_BASE + H_WO2 + DP, :]
    hpar = slab_ref[HEAD_BASE + H_PAR:HEAD_BASE + H_PAR + 16, :].astype(f32)
    bf_, bo1, bo2 = hpar[0:1, :], hpar[1:2, :], hpar[2:3, :]

    feat = jnp.dot(pooled.astype(bf16), Wf, preferred_element_type=f32) + bf_   # [GP, DP]
    z = jnp.maximum(
        jnp.dot(feat.astype(bf16), Wo1, preferred_element_type=f32) + bo1, 0.0)
    y = jnp.dot(z.astype(bf16), Wo2, preferred_element_type=f32) + bo2          # [GP, DP]

    # single full-tile [16,128] store: rows 0:GP = feat, rows GP:2GP = out
    out_ref[...] = jnp.concatenate([feat, y], axis=0)


def ginet_forward_pallas(slab):
    vmem = pl.BlockSpec(memory_space=pltpu.MemorySpace.VMEM)
    buf = pl.pallas_call(
        ginet_kernel,
        out_shape=jax.ShapeDtypeStruct((OUT_ROWS, DP), jnp.float32),
        in_specs=[vmem],
        out_specs=vmem,
    )(slab)
    h_pool = buf[0:N_GRAPHS, 0:FEAT_DIM]
    out = buf[GP:GP + N_GRAPHS, 0:FEAT_DIM // 2]
    return h_pool, out


# ----------------------------- pure-JAX f32 reference -------------------------
def ginet_forward_ref(h0, src, tgt, batch, ee, W1, b1, W2, b2, gamma, beta,
                      Wf, bf, Wo1, bo1, Wo2, bo2):
    n = h0.shape[0]
    h = h0
    for l in range(NUM_LAYER):
        msg = jnp.maximum(h[src] + ee[l], 0.0)
        aggr = jax.ops.segment_sum(msg, tgt, num_segments=n)
        h1 = jnp.maximum(aggr @ W1[l] + b1[l], 0.0)
        h2 = h1 @ W2[l] + b2[l]
        mean = h2.mean(0, keepdims=True)
        var = ((h2 - mean) ** 2).mean(0, keepdims=True)
        hbn = (h2 - mean) / jnp.sqrt(var + BN_EPS) * gamma[l] + beta[l]
        h = hbn if l == NUM_LAYER - 1 else jnp.maximum(hbn, 0.0)
    counts = jax.ops.segment_sum(jnp.ones((n,), jnp.float32), batch,
                                 num_segments=N_GRAPHS)
    pooled = jax.ops.segment_sum(h, batch, num_segments=N_GRAPHS) / counts[:, None]
    feat = pooled @ Wf + bf
    z = jnp.maximum(feat @ Wo1 + bo1, 0.0)
    return feat, z @ Wo2 + bo2


# ----------------------------- main ------------------------------------------
if __name__ == "__main__":
    key = jax.random.PRNGKey(0)
    ks = list(jax.random.split(key, 24))

    D, F, L = EMB_DIM, FEAT_DIM, NUM_LAYER
    N, E, G = N_NODES, N_EDGES, N_GRAPHS

    # ---- synthetic graph data (data.x, data.edge_index, data.edge_attr, data.batch)
    x = jnp.stack([
        jax.random.randint(ks[0], (N,), 0, NUM_ATOM_TYPE),
        jax.random.randint(ks[1], (N,), 0, NUM_CHIRALITY_TAG)], axis=1)          # [N, 2]
    edge_index = jax.random.randint(ks[2], (2, E), 0, N)                          # [2, E]
    edge_attr = jnp.stack([
        jax.random.randint(ks[3], (E,), 0, NUM_BOND_TYPE - 1),
        jax.random.randint(ks[4], (E,), 0, NUM_BOND_DIRECTION)], axis=1)          # [E, 2]
    batch = jnp.concatenate([jnp.zeros(N // 2, jnp.int32),
                             jnp.ones(N - N // 2, jnp.int32)])                    # [N]

    # ---- add self loops (edge_attr rows [4, 0]) ----------------------------------
    self_loops = jnp.stack([jnp.arange(N), jnp.arange(N)])
    ei_full = jnp.concatenate([edge_index, self_loops], axis=1)                   # [2, E_TOT]
    sl_attr = jnp.concatenate([jnp.full((N, 1), 4, edge_attr.dtype),
                               jnp.zeros((N, 1), edge_attr.dtype)], axis=1)
    ea_full = jnp.concatenate([edge_attr, sl_attr], axis=0)                       # [E_TOT, 2]

    # ---- deterministic parameter init ---------------------------------------------
    def w(k, shape, scale=0.1):
        return scale * jax.random.normal(k, shape, jnp.float32)

    x_emb1 = w(ks[5], (NUM_ATOM_TYPE, D))
    x_emb2 = w(ks[6], (NUM_CHIRALITY_TAG, D))
    e_emb1 = w(ks[7], (L, NUM_BOND_TYPE, D))
    e_emb2 = w(ks[8], (L, NUM_BOND_DIRECTION, D))
    W1 = w(ks[9], (L, D, 2 * D));  b1 = w(ks[10], (L, 1, 2 * D))
    W2 = w(ks[11], (L, 2 * D, D)); b2 = w(ks[12], (L, 1, D))
    gamma = jnp.ones((L, 1, D), jnp.float32)
    beta = jnp.zeros((L, 1, D), jnp.float32)
    Wf = w(ks[13], (D, F));  bf = w(ks[14], (1, F))
    Wo1 = w(ks[15], (F, F)); bo1 = w(ks[16], (1, F))
    Wo2 = w(ks[17], (F, F // 2)); bo2 = w(ks[18], (1, F // 2))

    # ---- host glue: embedding gathers (data-dependent) ----------------------------
    h0 = x_emb1[x[:, 0]] + x_emb2[x[:, 1]]                                        # [N, D]
    ee = (jnp.take(e_emb1, ea_full[:, 0], axis=1)
          + jnp.take(e_emb2, ea_full[:, 1], axis=1))                              # [L, E_TOT, D]

    src = np.asarray(ei_full[0]); tgt = np.asarray(ei_full[1])
    batch_np = np.asarray(batch)

    # ---- pack the single bf16 input slab (all blocks 16-row / 128-lane aligned) ---
    slab = np.zeros((TOTAL_ROWS, DP), np.float32)

    # structure + initial node features
    slab[OFF_S + np.arange(E_TOT), src] = 1.0                      # gather(S)
    slab[OFF_A + tgt, np.arange(E_TOT)] = 1.0                      # scatter-add(A)
    counts = np.bincount(batch_np, minlength=G).astype(np.float32)
    slab[OFF_POOL + batch_np, np.arange(N)] = 1.0 / counts[batch_np]
    slab[OFF_H0:OFF_H0 + N, 0:D] = np.asarray(h0)

    # per-layer parameters + edge embeddings
    W1n, W2n = np.asarray(W1), np.asarray(W2)
    b1n, b2n = np.asarray(b1), np.asarray(b2)
    gn, bn = np.asarray(gamma), np.asarray(beta)
    een = np.asarray(ee)
    for l in range(L):
        base = LAYER_BASE + l * LSTRIDE
        slab[base + L_W1:base + L_W1 + D, 0:2 * D] = W1n[l]
        slab[base + L_W2:base + L_W2 + 2 * D, 0:D] = W2n[l]
        slab[base + L_PAR + 0, 0:2 * D] = b1n[l, 0]
        slab[base + L_PAR + 1, 0:D] = b2n[l, 0]
        slab[base + L_PAR + 2, 0:D] = gn[l, 0]
        slab[base + L_PAR + 3, 0:D] = bn[l, 0]
        slab[base + L_EE:base + L_EE + E_TOT, 0:D] = een[l]

    # head parameters
    slab[HEAD_BASE + H_WF:HEAD_BASE + H_WF + D, 0:F] = np.asarray(Wf)
    slab[HEAD_BASE + H_WO1:HEAD_BASE + H_WO1 + F, 0:F] = np.asarray(Wo1)
    slab[HEAD_BASE + H_WO2:HEAD_BASE + H_WO2 + F, 0:F // 2] = np.asarray(Wo2)
    slab[HEAD_BASE + H_PAR + 0, 0:F] = np.asarray(bf)[0]
    slab[HEAD_BASE + H_PAR + 1, 0:F] = np.asarray(bo1)[0]
    slab[HEAD_BASE + H_PAR + 2, 0:F // 2] = np.asarray(bo2)[0]

    slab_bf16 = jnp.asarray(slab, jnp.bfloat16)

    # ---- run the fused Pallas kernel -----------------------------------------------
    h_pool, out = ginet_forward_pallas(slab_bf16)
    jax.block_until_ready((h_pool, out))

    # ---- verify against the full-precision f32 reference ---------------------------
    feat_ref, out_ref_v = ginet_forward_ref(h0, ei_full[0], ei_full[1], batch, ee,
                                            W1, b1, W2, b2, gamma, beta,
                                            Wf, bf, Wo1, bo1, Wo2, bo2)
    # bf16 MXU operands / bf16 slab storage (f32 accumulate + f32 BN stats)
    # vs f32 reference -> 2e-2 tolerance
    np.testing.assert_allclose(np.asarray(h_pool), np.asarray(feat_ref),
                               rtol=2e-2, atol=2e-2)
    np.testing.assert_allclose(np.asarray(out), np.asarray(out_ref_v),
                               rtol=2e-2, atol=2e-2)

    print("KERNEL_OK")
</pallas_src>

<mosaic_0001>
module attributes {stable_mosaic.version = 11 : i64} {
  func.func @ginet_kernel(%arg0: memref<2800x128xbf16, #tpu.memory_space<vmem>>, %arg1: memref<16x128xf32, #tpu.memory_space<vmem>>) attributes {dimension_semantics = [], scalar_prefetch = 0 : i64, scratch_operands = 0 : i64, tpu.core_type = #tpu.core_type<tc>} {
    %c0 = arith.constant 0 : index
    %c0_0 = arith.constant 0 : index
    %0 = vector.load %arg0[%c0, %c0_0] : memref<2800x128xbf16, #tpu.memory_space<vmem>>, vector<128x128xbf16>
    %c128 = arith.constant 128 : index
    %c0_1 = arith.constant 0 : index
    %1 = vector.load %arg0[%c128, %c0_1] : memref<2800x128xbf16, #tpu.memory_space<vmem>>, vector<128x128xbf16>
    %c256 = arith.constant 256 : index
    %c0_2 = arith.constant 0 : index
    %2 = vector.load %arg0[%c256, %c0_2] : memref<2800x128xbf16, #tpu.memory_space<vmem>>, vector<8x128xbf16>
    %c272 = arith.constant 272 : index
    %c0_3 = arith.constant 0 : index
    %3 = vector.load %arg0[%c272, %c0_3] : memref<2800x128xbf16, #tpu.memory_space<vmem>>, vector<128x128xbf16>
    %4 = arith.extf %3 : vector<128x128xbf16> to vector<128x128xf32>
    %c0_i32 = arith.constant 0 : i32
    %c4_i32 = arith.constant 4 : i32
    %5 = arith.addi %c0_i32, %c4_i32 : i32
    %c1_i32 = arith.constant 1 : i32
    %6 = scf.for %arg2 = %c0_i32 to %5 step %c1_i32 iter_args(%arg3 = %4) -> (vector<128x128xf32>)  : i32 {
      %c400_i32 = arith.constant 400 : i32
      %88 = arith.muli %arg2, %c400_i32 : i32
      %c400_i32_32 = arith.constant 400 : i32
      %89 = arith.addi %c400_i32_32, %88 : i32
      %90 = tpu.assume_multiple %89, 16 : i32
      %c0_i32_33 = arith.constant 0 : i32
      %91 = arith.addi %90, %c0_i32_33 : i32
      %92 = arith.index_cast %91 : i32 to index
      %c0_34 = arith.constant 0 : index
      %93 = vector.load %arg0[%92, %c0_34] : memref<2800x128xbf16, #tpu.memory_space<vmem>>, vector<128x128xbf16>
      %c128_i32 = arith.constant 128 : i32
      %94 = arith.addi %90, %c128_i32 : i32
      %95 = arith.index_cast %94 : i32 to index
      %c0_35 = arith.constant 0 : index
      %96 = vector.load %arg0[%95, %c0_35] : memref<2800x128xbf16, #tpu.memory_space<vmem>>, vector<128x128xbf16>
      %c256_i32 = arith.constant 256 : i32
      %97 = arith.addi %90, %c256_i32 : i32
      %98 = arith.index_cast %97 : i32 to index
      %c0_36 = arith.constant 0 : index
      %99 = vector.load %arg0[%98, %c0_36] : memref<2800x128xbf16, #tpu.memory_space<vmem>>, vector<16x128xbf16>
      %100 = arith.extf %99 : vector<16x128xbf16> to vector<16x128xf32>
      %101 = vector.extract_strided_slice %100 {offsets = [0, 0], sizes = [1, 128], strides = [1, 1]} : vector<16x128xf32> to vector<1x128xf32>
      %102 = vector.extract_strided_slice %100 {offsets = [1, 0], sizes = [1, 128], strides = [1, 1]} : vector<16x128xf32> to vector<1x128xf32>
      %103 = vector.extract_strided_slice %100 {offsets = [2, 0], sizes = [1, 128], strides = [1, 1]} : vector<16x128xf32> to vector<1x128xf32>
      %104 = vector.extract_strided_slice %100 {offsets = [3, 0], sizes = [1, 128], strides = [1, 1]} : vector<16x128xf32> to vector<1x128xf32>
      %c272_i32 = arith.constant 272 : i32
      %105 = arith.addi %90, %c272_i32 : i32
      %106 = arith.index_cast %105 : i32 to index
      %c0_37 = arith.constant 0 : index
      %107 = vector.load %arg0[%106, %c0_37] : memref<2800x128xbf16, #tpu.memory_space<vmem>>, vector<128x128xbf16>
      %108 = arith.extf %107 : vector<128x128xbf16> to vector<128x128xf32>
      %109 = arith.truncf %arg3 : vector<128x128xf32> to vector<128x128xbf16>
      %cst_38 = arith.constant dense<0.000000e+00> : vector<128x128xf32>
      %110 = tpu.matmul %0, %109, %cst_38 {dimension_numbers = #tpu.dot_dimension_numbers<[1], [0], [0], [1], [0, 0, 1, 1], [], []>} : vector<128x128xbf16>, vector<128x128xbf16>, vector<128x128xf32> -> vector<128x128xf32>
      %111 = arith.addf %110, %108 : vector<128x128xf32>
      %cst_39 = arith.constant 0.000000e+00 : f32
      %112 = vector.broadcast %cst_39 : f32 to vector<128x128xf32>
      %113 = arith.maximumf %111, %112 : vector<128x128xf32>
      %114 = arith.truncf %113 : vector<128x128xf32> to vector<128x128xbf16>
      %cst_40 = arith.constant dense<0.000000e+00> : vector<128x128xf32>
      %115 = tpu.matmul %1, %114, %cst_40 {dimension_numbers = #tpu.dot_dimension_numbers<[1], [0], [0], [1], [0, 0, 1, 1], [], []>} : vector<128x128xbf16>, vector<128x128xbf16>, vector<128x128xf32> -> vector<128x128xf32>
      %116 = arith.truncf %115 : vector<128x128xf32> to vector<128x128xbf16>
      %cst_41 = arith.constant dense<0.000000e+00> : vector<128x128xf32>
      %117 = tpu.matmul %116, %93, %cst_41 {dimension_numbers = #tpu.dot_dimension_numbers<[1], [0], [0], [1], [0, 0, 1, 1], [], []>} : vector<128x128xbf16>, vector<128x128xbf16>, vector<128x128xf32> -> vector<128x128xf32>
      %118 = vector.broadcast %101 : vector<1x128xf32> to vector<128x128xf32>
      %119 = arith.addf %117, %118 : vector<128x128xf32>
      %cst_42 = arith.constant 0.000000e+00 : f32
      %120 = vector.broadcast %cst_42 : f32 to vector<128x128xf32>
      %121 = arith.maximumf %119, %120 : vector<128x128xf32>
      %122 = arith.truncf %121 : vector<128x128xf32> to vector<128x128xbf16>
      %cst_43 = arith.constant dense<0.000000e+00> : vector<128x128xf32>
      %123 = tpu.matmul %122, %96, %cst_43 {dimension_numbers = #tpu.dot_dimension_numbers<[1], [0], [0], [1], [0, 0, 1, 1], [], []>} : vector<128x128xbf16>, vector<128x128xbf16>, vector<128x128xf32> -> vector<128x128xf32>
      %124 = vector.broadcast %102 : vector<1x128xf32> to vector<128x128xf32>
      %125 = arith.addf %123, %124 : vector<128x128xf32>
      %126 = tpu.iota {dimensions = array<i32: 0>} : vector<128x128xi32>
      %c16_i32_44 = arith.constant 16 : i32
      %127 = vector.broadcast %c16_i32_44 : i32 to vector<128x128xi32>
      %128 = arith.cmpi slt, %126, %127 : vector<128x128xi32>
      %cst_45 = arith.constant 0.000000e+00 : f32
      %129 = vector.broadcast %cst_45 : f32 to vector<128x128xf32>
      %130 = arith.select %128, %125, %129 : vector<128x128xi1>, vector<128x128xf32>
      %cst_46 = arith.constant dense<0.000000e+00> : vector<128xf32>
      %131 = vector.multi_reduction <add>, %130, %cst_46 [0] : vector<128x128xf32> to vector<128xf32>
      %132 = vector.shape_cast %131 : vector<128xf32> to vector<1x128xf32>
      %cst_47 = arith.constant 6.250000e-02 : f32
      %133 = vector.broadcast %cst_47 : f32 to vector<1x128xf32>
      %134 = arith.mulf %132, %133 : vector<1x128xf32>
      %135 = arith.mulf %130, %125 : vector<128x128xf32>
      %cst_48 = arith.constant dense<0.000000e+00> : vector<128xf32>
      %136 = vector.multi_reduction <add>, %135, %cst_48 [0] : vector<128x128xf32> to vector<128xf32>
      %137 = vector.shape_cast %136 : vector<128xf32> to vector<1x128xf32>
      %cst_49 = arith.constant 6.250000e-02 : f32
      %138 = vector.broadcast %cst_49 : f32 to vector<1x128xf32>
      %139 = arith.mulf %137, %138 : vector<1x128xf32>
      %140 = arith.mulf %134, %134 : vector<1x128xf32>
      %141 = arith.subf %139, %140 : vector<1x128xf32>
      %cst_50 = arith.constant 0.000000e+00 : f32
      %142 = vector.broadcast %cst_50 : f32 to vector<1x128xf32>
      %143 = arith.maximumf %141, %142 : vector<1x128xf32>
      %cst_51 = arith.constant 9.99999974E-6 : f32
      %144 = vector.broadcast %cst_51 : f32 to vector<1x128xf32>
      %145 = arith.addf %143, %144 : vector<1x128xf32>
      %146 = math.rsqrt %145 : vector<1x128xf32>
      %147 = arith.mulf %146, %103 : vector<1x128xf32>
      %148 = vector.broadcast %134 : vector<1x128xf32> to vector<128x128xf32>
      %149 = arith.subf %125, %148 : vector<128x128xf32>
      %150 = vector.broadcast %147 : vector<1x128xf32> to vector<128x128xf32>
      %151 = arith.mulf %149, %150 : vector<128x128xf32>
      %152 = vector.broadcast %104 : vector<1x128xf32> to vector<128x128xf32>
      %153 = arith.addf %151, %152 : vector<128x128xf32>
      %cst_52 = arith.constant 0.000000e+00 : f32
      %154 = vector.broadcast %cst_52 : f32 to vector<128x128xf32>
      %155 = arith.maximumf %153, %154 : vector<128x128xf32>
      scf.yield %155 : vector<128x128xf32>
    }
    %c4_i32_4 = arith.constant 4 : i32
    %c2000 = arith.constant 2000 : index
    %c0_5 = arith.constant 0 : index
    %7 = vector.load %arg0[%c2000, %c0_5] : memref<2800x128xbf16, #tpu.memory_space<vmem>>, vector<128x128xbf16>
    %c2128 = arith.constant 2128 : index
    %c0_6 = arith.constant 0 : index
    %8 = vector.load %arg0[%c2128, %c0_6] : memref<2800x128xbf16, #tpu.memory_space<vmem>>, vector<128x128xbf16>
    %c2256 = arith.constant 2256 : index
    %c0_7 = arith.constant 0 : index
    %9 = vector.load %arg0[%c2256, %c0_7] : memref<2800x128xbf16, #tpu.memory_space<vmem>>, vector<16x128xbf16>
    %10 = arith.extf %9 : vector<16x128xbf16> to vector<16x128xf32>
    %11 = vector.extract_strided_slice %10 {offsets = [0, 0], sizes = [1, 128], strides = [1, 1]} : vector<16x128xf32> to vector<1x128xf32>
    %12 = vector.extract_strided_slice %10 {offsets = [1, 0], sizes = [1, 128], strides = [1, 1]} : vector<16x128xf32> to vector<1x128xf32>
    %13 = vector.extract_strided_slice %10 {offsets = [2, 0], sizes = [1, 128], strides = [1, 1]} : vector<16x128xf32> to vector<1x128xf32>
    %14 = vector.extract_strided_slice %10 {offsets = [3, 0], sizes = [1, 128], strides = [1, 1]} : vector<16x128xf32> to vector<1x128xf32>
    %c2272 = arith.constant 2272 : index
    %c0_8 = arith.constant 0 : index
    %15 = vector.load %arg0[%c2272, %c0_8] : memref<2800x128xbf16, #tpu.memory_space<vmem>>, vector<128x128xbf16>
    %16 = arith.extf %15 : vector<128x128xbf16> to vector<128x128xf32>
    %17 = arith.truncf %6 : vector<128x128xf32> to vector<128x128xbf16>
    %cst = arith.constant dense<0.000000e+00> : vector<128x128xf32>
    %18 = tpu.matmul %0, %17, %cst {dimension_numbers = #tpu.dot_dimension_numbers<[1], [0], [0], [1], [0, 0, 1, 1], [], []>} : vector<128x128xbf16>, vector<128x128xbf16>, vector<128x128xf32> -> vector<128x128xf32>
    %19 = arith.addf %18, %16 : vector<128x128xf32>
    %cst_9 = arith.constant 0.000000e+00 : f32
    %20 = vector.broadcast %cst_9 : f32 to vector<128x128xf32>
    %21 = arith.maximumf %19, %20 : vector<128x128xf32>
    %22 = arith.truncf %21 : vector<128x128xf32> to vector<128x128xbf16>
    %cst_10 = arith.constant dense<0.000000e+00> : vector<128x128xf32>
    %23 = tpu.matmul %1, %22, %cst_10 {dimension_numbers = #tpu.dot_dimension_numbers<[1], [0], [0], [1], [0, 0, 1, 1], [], []>} : vector<128x128xbf16>, vector<128x128xbf16>, vector<128x128xf32> -> vector<128x128xf32>
    %24 = arith.truncf %23 : vector<128x128xf32> to vector<128x128xbf16>
    %cst_11 = arith.constant dense<0.000000e+00> : vector<128x128xf32>
    %25 = tpu.matmul %24, %7, %cst_11 {dimension_numbers = #tpu.dot_dimension_numbers<[1], [0], [0], [1], [0, 0, 1, 1], [], []>} : vector<128x128xbf16>, vector<128x128xbf16>, vector<128x128xf32> -> vector<128x128xf32>
    %26 = vector.broadcast %11 : vector<1x128xf32> to vector<128x128xf32>
    %27 = arith.addf %25, %26 : vector<128x128xf32>
    %cst_12 = arith.constant 0.000000e+00 : f32
    %28 = vector.broadcast %cst_12 : f32 to vector<128x128xf32>
    %29 = arith.maximumf %27, %28 : vector<128x128xf32>
    %30 = arith.truncf %29 : vector<128x128xf32> to vector<128x128xbf16>
    %cst_13 = arith.constant dense<0.000000e+00> : vector<128x128xf32>
    %31 = tpu.matmul %30, %8, %cst_13 {dimension_numbers = #tpu.dot_dimension_numbers<[1], [0], [0], [1], [0, 0, 1, 1], [], []>} : vector<128x128xbf16>, vector<128x128xbf16>, vector<128x128xf32> -> vector<128x128xf32>
    %32 = vector.broadcast %12 : vector<1x128xf32> to vector<128x128xf32>
    %33 = arith.addf %31, %32 : vector<128x128xf32>
    %34 = tpu.iota {dimensions = array<i32: 0>} : vector<128x128xi32>
    %c16_i32 = arith.constant 16 : i32
    %35 = vector.broadcast %c16_i32 : i32 to vector<128x128xi32>
    %36 = arith.cmpi slt, %34, %35 : vector<128x128xi32>
    %cst_14 = arith.constant 0.000000e+00 : f32
    %37 = vector.broadcast %cst_14 : f32 to vector<128x128xf32>
    %38 = arith.select %36, %33, %37 : vector<128x128xi1>, vector<128x128xf32>
    %cst_15 = arith.constant dense<0.000000e+00> : vector<128xf32>
    %39 = vector.multi_reduction <add>, %38, %cst_15 [0] : vector<128x128xf32> to vector<128xf32>
    %40 = vector.shape_cast %39 : vector<128xf32> to vector<1x128xf32>
    %cst_16 = arith.constant 6.250000e-02 : f32
    %41 = vector.broadcast %cst_16 : f32 to vector<1x128xf32>
    %42 = arith.mulf %40, %41 : vector<1x128xf32>
    %43 = arith.mulf %38, %33 : vector<128x128xf32>
    %cst_17 = arith.constant dense<0.000000e+00> : vector<128xf32>
    %44 = vector.multi_reduction <add>, %43, %cst_17 [0] : vector<128x128xf32> to vector<128xf32>
    %45 = vector.shape_cast %44 : vector<128xf32> to vector<1x128xf32>
    %cst_18 = arith.constant 6.250000e-02 : f32
    %46 = vector.broadcast %cst_18 : f32 to vector<1x128xf32>
    %47 = arith.mulf %45, %46 : vector<1x128xf32>
    %48 = arith.mulf %42, %42 : vector<1x128xf32>
    %49 = arith.subf %47, %48 : vector<1x128xf32>
    %cst_19 = arith.constant 0.000000e+00 : f32
    %50 = vector.broadcast %cst_19 : f32 to vector<1x128xf32>
    %51 = arith.maximumf %49, %50 : vector<1x128xf32>
    %cst_20 = arith.constant 9.99999974E-6 : f32
    %52 = vector.broadcast %cst_20 : f32 to vector<1x128xf32>
    %53 = arith.addf %51, %52 : vector<1x128xf32>
    %54 = math.rsqrt %53 : vector<1x128xf32>
    %55 = arith.mulf %54, %13 : vector<1x128xf32>
    %56 = arith.truncf %33 : vector<128x128xf32> to vector<128x128xbf16>
    %cst_21 = arith.constant dense<0.000000e+00> : vector<8x128xf32>
    %57 = tpu.matmul %2, %56, %cst_21 {dimension_numbers = #tpu.dot_dimension_numbers<[1], [0], [0], [1], [0, 0, 1, 1], [], []>} : vector<8x128xbf16>, vector<128x128xbf16>, vector<8x128xf32> -> vector<8x128xf32>
    %58 = vector.broadcast %42 : vector<1x128xf32> to vector<8x128xf32>
    %59 = arith.subf %57, %58 : vector<8x128xf32>
    %60 = vector.broadcast %55 : vector<1x128xf32> to vector<8x128xf32>
    %61 = arith.mulf %59, %60 : vector<8x128xf32>
    %62 = vector.broadcast %14 : vector<1x128xf32> to vector<8x128xf32>
    %63 = arith.addf %61, %62 : vector<8x128xf32>
    %c2400 = arith.constant 2400 : index
    %c0_22 = arith.constant 0 : index
    %64 = vector.load %arg0[%c2400, %c0_22] : memref<2800x128xbf16, #tpu.memory_space<vmem>>, vector<128x128xbf16>
    %c2528 = arith.constant 2528 : index
    %c0_23 = arith.constant 0 : index
    %65 = vector.load %arg0[%c2528, %c0_23] : memref<2800x128xbf16, #tpu.memory_space<vmem>>, vector<128x128xbf16>
    %c2656 = arith.constant 2656 : index
    %c0_24 = arith.constant 0 : index
    %66 = vector.load %arg0[%c2656, %c0_24] : memref<2800x128xbf16, #tpu.memory_space<vmem>>, vector<128x128xbf16>
    %c2784 = arith.constant 2784 : index
    %c0_25 = arith.constant 0 : index
    %67 = vector.load %arg0[%c2784, %c0_25] : memref<2800x128xbf16, #tpu.memory_space<vmem>>, vector<16x128xbf16>
    %68 = arith.extf %67 : vector<16x128xbf16> to vector<16x128xf32>
    %69 = vector.extract_strided_slice %68 {offsets = [0, 0], sizes = [1, 128], strides = [1, 1]} : vector<16x128xf32> to vector<1x128xf32>
    %70 = vector.extract_strided_slice %68 {offsets = [1, 0], sizes = [1, 128], strides = [1, 1]} : vector<16x128xf32> to vector<1x128xf32>
    %71 = vector.extract_strided_slice %68 {offsets = [2, 0], sizes = [1, 128], strides = [1, 1]} : vector<16x128xf32> to vector<1x128xf32>
    %72 = arith.truncf %63 : vector<8x128xf32> to vector<8x128xbf16>
    %cst_26 = arith.constant dense<0.000000e+00> : vector<8x128xf32>
    %73 = tpu.matmul %72, %64, %cst_26 {dimension_numbers = #tpu.dot_dimension_numbers<[1], [0], [0], [1], [0, 0, 1, 1], [], []>} : vector<8x128xbf16>, vector<128x128xbf16>, vector<8x128xf32> -> vector<8x128xf32>
    %74 = vector.broadcast %69 : vector<1x128xf32> to vector<8x128xf32>
    %75 = arith.addf %73, %74 : vector<8x128xf32>
    %76 = arith.truncf %75 : vector<8x128xf32> to vector<8x128xbf16>
    %cst_27 = arith.constant dense<0.000000e+00> : vector<8x128xf32>
    %77 = tpu.matmul %76, %65, %cst_27 {dimension_numbers = #tpu.dot_dimension_numbers<[1], [0], [0], [1], [0, 0, 1, 1], [], []>} : vector<8x128xbf16>, vector<128x128xbf16>, vector<8x128xf32> -> vector<8x128xf32>
    %78 = vector.broadcast %70 : vector<1x128xf32> to vector<8x128xf32>
    %79 = arith.addf %77, %78 : vector<8x128xf32>
    %cst_28 = arith.constant 0.000000e+00 : f32
    %80 = vector.broadcast %cst_28 : f32 to vector<8x128xf32>
    %81 = arith.maximumf %79, %80 : vector<8x128xf32>
    %82 = arith.truncf %81 : vector<8x128xf32> to vector<8x128xbf16>
    %cst_29 = arith.constant dense<0.000000e+00> : vector<8x128xf32>
    %83 = tpu.matmul %82, %66, %cst_29 {dimension_numbers = #tpu.dot_dimension_numbers<[1], [0], [0], [1], [0, 0, 1, 1], [], []>} : vector<8x128xbf16>, vector<128x128xbf16>, vector<8x128xf32> -> vector<8x128xf32>
    %84 = vector.broadcast %71 : vector<1x128xf32> to vector<8x128xf32>
    %85 = arith.addf %83, %84 : vector<8x128xf32>
    %86 = tpu.concatenate %75, %85 in 0 : vector<8x128xf32>, vector<8x128xf32> -> vector<16x128xf32>
    %c0_30 = arith.constant 0 : index
    %c0_31 = arith.constant 0 : index
    %87 = vector.load %arg1[%c0_30, %c0_31] : memref<16x128xf32, #tpu.memory_space<vmem>>, vector<16x128xf32>
    tpu.vector_store %arg1[%c0_30, %c0_31], %86 {strides = array<i32>} : memref<16x128xf32, #tpu.memory_space<vmem>>, vector<16x128xf32>,
    return
  }
}

</mosaic_0001>

<llo_original>
// kernel: tpu_custom_call.1
$region0: #{tpu_custom_call.1}
  #allocation0 [shape = 'u32[]', space=smem, size = 0x4, offset = 0x4, fixed_abs, tag = 'smem constant byte address 0x4 - core index']
  #allocation1 [shape = 'u32[144,128]{1,0:T(1,128)}', space=vmem, size = 0x12000, scoped, tag = 'internal scratch']
  %s0 = inlined_call_operand.hbm [shape: bf16[2800,128], index: 0, kind: input, shape index: {}]
  %s1 = inlined_call_operand.hbm [shape: f32[16,128], index: 1, kind: output, shape index: {}]
  %s2 = sld [smem:[#allocation0]]
  $region25: #{tpu_custom_call.1} parent=0
    _
  %s4 = ssub.s32 1, %s2
  %s5 = scalar_select 0, %s4, %s2
  $region1: #{tpu_custom_call.1} parent=0
    #allocation2 [shape = 'u8[716800]{0}', space=vmem, size = 0xaf000, scoped, tag = 'input window, operand 0, single buffered']
    #allocation3 [shape = 's32[1]{0}', space=sflag, size = 0x4, scoped, tag = 'scoped memory for tpu_custom_call.1']
    #allocation4 [shape = 's32[1]{0}', space=sflag, size = 0x4, scoped, tag = 'scoped memory for tpu_custom_call.1']
    #allocation5 [shape = 'u8[8192]{0}', space=vmem, size = 0x2000, scoped, tag = 'output window, operand 0, single buffered']
    %6 = vsyncpa [#allocation3], 0
    %7 = vsyncpa [#allocation4], 0
    // Predicated region
    $region2: #{tpu_custom_call.1} parent=1 // pred_check
      _
    $region3: #{tpu_custom_call.1} parent=1 // pred_check_branch
      %9 = sbr.rel (0) target = $region5
    $region4: #{tpu_custom_call.1} parent=1 // pred_region
      %s11 = ssub.s32 22400, 22400
      %12 = vsyncadd [#allocation3], %s11
      %s13 = sshll.u32 [#allocation2], 4
      %s14 = int_to_ptr.vmem [resolvable:$true] %s13
      %19 = dma.hbm_to_vmem [thread:$0]  %s0, 22400, %s14, [#allocation3], 64, 64, 4
    $region5: #{tpu_custom_call.1} parent=1 // pred_fallthru
      _
    // Predicated region
    $region6: #{tpu_custom_call.1} parent=1 // pred_check
      _
    $region7: #{tpu_custom_call.1} parent=1 // pred_check_branch
      %21 = sbr.rel (0) target = $region9
    $region8: #{tpu_custom_call.1} parent=1 // pred_region
      %22 = dma.done [#allocation3], 22400
    $region9: #{tpu_custom_call.1} parent=1 // pred_fallthru
      _
    %v24 = vld [vmem:[#allocation2] sm:$0xf]
    %v25 = vld [vmem:[#allocation2 + $0x4] sm:$0xf]
    %v26 = vld [vmem:[#allocation2 + $0x8] sm:$0xf]
    %v27 = vld [vmem:[#allocation2 + $0xc] sm:$0xf]
    %v28 = vld [vmem:[#allocation2 + $0x10] sm:$0xf]
    %v29 = vld [vmem:[#allocation2 + $0x14] sm:$0xf]
    %v30 = vld [vmem:[#allocation2 + $0x18] sm:$0xf]
    %v31 = vld [vmem:[#allocation2 + $0x1c] sm:$0xf]
    %v32 = vld [vmem:[#allocation2 + $0x20] sm:$0xf]
    %v33 = vld [vmem:[#allocation2 + $0x24] sm:$0xf]
    %v34 = vld [vmem:[#allocation2 + $0x28] sm:$0xf]
    %v35 = vld [vmem:[#allocation2 + $0x2c] sm:$0xf]
    %v36 = vld [vmem:[#allocation2 + $0x30] sm:$0xf]
    %v37 = vld [vmem:[#allocation2 + $0x34] sm:$0xf]
    %v38 = vld [vmem:[#allocation2 + $0x38] sm:$0xf]
    %v39 = vld [vmem:[#allocation2 + $0x3c] sm:$0xf]
    %v40 = vld [vmem:[#allocation2 + $0x40] sm:$0xf]
    %v41 = vld [vmem:[#allocation2 + $0x44] sm:$0xf]
    %v42 = vld [vmem:[#allocation2 + $0x48] sm:$0xf]
    %v43 = vld [vmem:[#allocation2 + $0x4c] sm:$0xf]
    %v44 = vld [vmem:[#allocation2 + $0x50] sm:$0xf]
    %v45 = vld [vmem:[#allocation2 + $0x54] sm:$0xf]
    %v46 = vld [vmem:[#allocation2 + $0x58] sm:$0xf]
    %v47 = vld [vmem:[#allocation2 + $0x5c] sm:$0xf]
    %v48 = vld [vmem:[#allocation2 + $0x60] sm:$0xf]
    %v49 = vld [vmem:[#allocation2 + $0x64] sm:$0xf]
    %v50 = vld [vmem:[#allocation2 + $0x68] sm:$0xf]
    %v51 = vld [vmem:[#allocation2 + $0x6c] sm:$0xf]
    %v52 = vld [vmem:[#allocation2 + $0x70] sm:$0xf]
    %v53 = vld [vmem:[#allocation2 + $0x74] sm:$0xf]
    %v54 = vld [vmem:[#allocation2 + $0x78] sm:$0xf]
    %v55 = vld [vmem:[#allocation2 + $0x7c] sm:$0xf]
    %v56 = vld [vmem:[#allocation2 + $0x80] sm:$0xf]
    %v57 = vld [vmem:[#allocation2 + $0x88] sm:$0xf]
    %v58 = vld [vmem:[#allocation2 + $0x8c] sm:$0xf]
    %v59 = vld [vmem:[#allocation2 + $0x90] sm:$0xf]
    %v60 = vld [vmem:[#allocation2 + $0x94] sm:$0xf]
    %v61 = vld [vmem:[#allocation2 + $0x98] sm:$0xf]
    %v62 = vld [vmem:[#allocation2 + $0x9c] sm:$0xf]
    %v63 = vld [vmem:[#allocation2 + $0xa0] sm:$0xf]
    %v64 = vld [vmem:[#allocation2 + $0xa4] sm:$0xf]
    %v65 = vld [vmem:[#allocation2 + $0xa8] sm:$0xf]
    %v66 = vld [vmem:[#allocation2 + $0xac] sm:$0xf]
    %v67 = vld [vmem:[#allocation2 + $0xb0] sm:$0xf]
    %v68 = vld [vmem:[#allocation2 + $0xb4] sm:$0xf]
    %v69 = vld [vmem:[#allocation2 + $0xb8] sm:$0xf]
    %v70 = vld [vmem:[#allocation2 + $0xbc] sm:$0xf]
    %v71 = vld [vmem:[#allocation2 + $0xc0] sm:$0xf]
    %v72 = vld [vmem:[#allocation2 + $0xc4] sm:$0xf]
    %v73 = vunpack.c.l.bf16 %v57
    %v74 = vunpack.c.l.bf16 %v58
    %v75 = vunpack.c.l.bf16 %v59
    %v76 = vunpack.c.l.bf16 %v60
    %v77 = vunpack.c.l.bf16 %v61
    %v78 = vunpack.c.l.bf16 %v62
    %v79 = vunpack.c.l.bf16 %v63
    %v80 = vunpack.c.l.bf16 %v64
    %v81 = vunpack.c.l.bf16 %v65
    %v82 = vunpack.c.l.bf16 %v66
    %v83 = vunpack.c.l.bf16 %v67
    %v84 = vunpack.c.l.bf16 %v68
    %v85 = vunpack.c.l.bf16 %v69
    %v86 = vunpack.c.l.bf16 %v70
    %v87 = vunpack.c.l.bf16 %v71
    %v88 = vunpack.c.l.bf16 %v72
    loop: start=0, step=1, limit=4
    $region10: #{tpu_custom_call.1} parent=1 // loop_pre_header
      _
    $region11: #{tpu_custom_call.1} parent=1 // loop_header
      %s90 = sphi 0, %s94
      %p91 = scmp.ge.s32.totalorder %s90, 4
      %v95 = vphi %v73, %v1021
      %v96 = vphi %v74, %v1022
      %v97 = vphi %v75, %v1023
      %v98 = vphi %v76, %v1024
      %v99 = vphi %v77, %v1025
      %v100 = vphi %v78, %v1026
      %v101 = vphi %v79, %v1027
      %v102 = vphi %v80, %v1028
      %v103 = vphi %v81, %v1029
      %v104 = vphi %v82, %v1030
      %v105 = vphi %v83, %v1031
      %v106 = vphi %v84, %v1032
      %v107 = vphi %v85, %v1033
      %v108 = vphi %v86, %v1034
      %v109 = vphi %v87, %v1035
      %v110 = vphi %v88, %v1036
    $region12: #{tpu_custom_call.1} parent=1 // loop_header_branch
      %93 = sbr.rel (%p91) target = $region16
    $region13: #{tpu_custom_call.1} parent=1 // loop_body
      %s111 = smul.u32 %s90, 400
      %s112 = sadd.s32 %s111, 400
      %s113 = sshra.s32 %s112, 3
      %s114 = sand.u32 %s112, 7
      %s115 = smul.addr %s113, 4
      %s116 = scalar_lea.vmem [#allocation2], %s115
      %v117 = vld [vmem:[%s116] sm:$0xf]
      %v118 = vld [vmem:[%s116 + $0x4] sm:$0xf]
      %v119 = vld [vmem:[%s116 + $0x8] sm:$0xf]
      %v120 = vld [vmem:[%s116 + $0xc] sm:$0xf]
      %v121 = vld [vmem:[%s116 + $0x10] sm:$0xf]
      %v122 = vld [vmem:[%s116 + $0x14] sm:$0xf]
      %v123 = vld [vmem:[%s116 + $0x18] sm:$0xf]
      %v124 = vld [vmem:[%s116 + $0x1c] sm:$0xf]
      %v125 = vld [vmem:[%s116 + $0x20] sm:$0xf]
      %v126 = vld [vmem:[%s116 + $0x24] sm:$0xf]
      %v127 = vld [vmem:[%s116 + $0x28] sm:$0xf]
      %v128 = vld [vmem:[%s116 + $0x2c] sm:$0xf]
      %v129 = vld [vmem:[%s116 + $0x30] sm:$0xf]
      %v130 = vld [vmem:[%s116 + $0x34] sm:$0xf]
      %v131 = vld [vmem:[%s116 + $0x38] sm:$0xf]
      %v132 = vld [vmem:[%s116 + $0x3c] sm:$0xf]
      %s133 = sadd.s32 %s112, 128
      %s134 = sshra.s32 %s133, 3
      %s135 = sand.u32 %s133, 7
      %s136 = smul.addr %s134, 4
      %s137 = scalar_lea.vmem [#allocation2], %s136
      %v138 = vld [vmem:[%s137] sm:$0xf]
      %v139 = vld [vmem:[%s137 + $0x4] sm:$0xf]
      %v140 = vld [vmem:[%s137 + $0x8] sm:$0xf]
      %v141 = vld [vmem:[%s137 + $0xc] sm:$0xf]
      %v142 = vld [vmem:[%s137 + $0x10] sm:$0xf]
      %v143 = vld [vmem:[%s137 + $0x14] sm:$0xf]
      %v144 = vld [vmem:[%s137 + $0x18] sm:$0xf]
      %v145 = vld [vmem:[%s137 + $0x1c] sm:$0xf]
      %v146 = vld [vmem:[%s137 + $0x20] sm:$0xf]
      %v147 = vld [vmem:[%s137 + $0x24] sm:$0xf]
      %v148 = vld [vmem:[%s137 + $0x28] sm:$0xf]
      %v149 = vld [vmem:[%s137 + $0x2c] sm:$0xf]
      %v150 = vld [vmem:[%s137 + $0x30] sm:$0xf]
      %v151 = vld [vmem:[%s137 + $0x34] sm:$0xf]
      %v152 = vld [vmem:[%s137 + $0x38] sm:$0xf]
      %v153 = vld [vmem:[%s137 + $0x3c] sm:$0xf]
      %s154 = sadd.s32 %s112, 256
      %s155 = sshra.s32 %s154, 3
      %s156 = sand.u32 %s154, 7
      %s157 = smul.addr %s155, 4
      %s158 = scalar_lea.vmem [#allocation2], %s157
      %v159 = vld [vmem:[%s158] sm:$0xf]
      %v160 = vunpack.c.l.bf16 %v159
      %s161 = sadd.s32 %s112, 272
      %s162 = sshra.s32 %s161, 3
      %s163 = sand.u32 %s161, 7
      %s164 = smul.addr %s162, 4
      %s165 = scalar_lea.vmem [#allocation2], %s164
      %v166 = vld [vmem:[%s165] sm:$0xf]
      %v167 = vld [vmem:[%s165 + $0x4] sm:$0xf]
      %v168 = vld [vmem:[%s165 + $0x8] sm:$0xf]
      %v169 = vld [vmem:[%s165 + $0xc] sm:$0xf]
      %v170 = vld [vmem:[%s165 + $0x10] sm:$0xf]
      %v171 = vld [vmem:[%s165 + $0x14] sm:$0xf]
      %v172 = vld [vmem:[%s165 + $0x18] sm:$0xf]
      %v173 = vld [vmem:[%s165 + $0x1c] sm:$0xf]
      %v174 = vld [vmem:[%s165 + $0x20] sm:$0xf]
      %v175 = vld [vmem:[%s165 + $0x24] sm:$0xf]
      %v176 = vld [vmem:[%s165 + $0x28] sm:$0xf]
      %v177 = vld [vmem:[%s165 + $0x2c] sm:$0xf]
      %v178 = vld [vmem:[%s165 + $0x30] sm:$0xf]
      %v179 = vld [vmem:[%s165 + $0x34] sm:$0xf]
      %v180 = vld [vmem:[%s165 + $0x38] sm:$0xf]
      %v181 = vld [vmem:[%s165 + $0x3c] sm:$0xf]
      %v182 = vunpack.c.l.bf16 %v166
      %v183 = vunpack.c.l.bf16 %v167
      %v184 = vunpack.c.l.bf16 %v168
      %v185 = vunpack.c.l.bf16 %v169
      %v186 = vunpack.c.l.bf16 %v170
      %v187 = vunpack.c.l.bf16 %v171
      %v188 = vunpack.c.l.bf16 %v172
      %v189 = vunpack.c.l.bf16 %v173
      %v190 = vunpack.c.l.bf16 %v174
      %v191 = vunpack.c.l.bf16 %v175
      %v192 = vunpack.c.l.bf16 %v176
      %v193 = vunpack.c.l.bf16 %v177
      %v194 = vunpack.c.l.bf16 %v178
      %v195 = vunpack.c.l.bf16 %v179
      %v196 = vunpack.c.l.bf16 %v180
      %v197 = vunpack.c.l.bf16 %v181
      %v198 = vpack.c.bf16 %v96, %v95
      %v199 = vpack.c.bf16 %v98, %v97
      %v200 = vpack.c.bf16 %v100, %v99
      %v201 = vpack.c.bf16 %v102, %v101
      %v202 = vpack.c.bf16 %v104, %v103
      %v203 = vpack.c.bf16 %v106, %v105
      %v204 = vpack.c.bf16 %v108, %v107
      %v205 = vpack.c.bf16 %v110, %v109
      %v222 = vunpack.c.l.b16 %v24
      %v223 = vunpack.c.l.b16 %v25
      %v224 = vunpack.c.l.b16 %v26
      %v225 = vunpack.c.l.b16 %v27
      %v226 = vunpack.c.l.b16 %v28
      %v227 = vunpack.c.l.b16 %v29
      %v228 = vunpack.c.l.b16 %v30
      %v229 = vunpack.c.l.b16 %v31
      %v230 = vunpack.c.l.b16 %v32
      %v231 = vunpack.c.l.b16 %v33
      %v232 = vunpack.c.l.b16 %v34
      %v233 = vunpack.c.l.b16 %v35
      %v234 = vunpack.c.l.b16 %v36
      %v235 = vunpack.c.l.b16 %v37
      %v236 = vunpack.c.l.b16 %v38
      %v237 = vunpack.c.l.b16 %v39
      %v238 = vpack.c.b16 %v223, %v222
      %v239 = vpack.c.b16 %v225, %v224
      %v240 = vpack.c.b16 %v227, %v226
      %v241 = vpack.c.b16 %v229, %v228
      %v242 = vpack.c.b16 %v231, %v230
      %v243 = vpack.c.b16 %v233, %v232
      %v244 = vpack.c.b16 %v235, %v234
      %v245 = vpack.c.b16 %v237, %v236
      %254 = vmatprep.subr.bf16.mxu0 0
      %255 = vmatpush1.bf16.msra.mxu0 %v205
      %256 = vmatprep.subr.bf16.mxu0 0
      %257 = vmatpush1.bf16.msra.mxu0 %v204
      %258 = vmatprep.subr.bf16.mxu0 0
      %259 = vmatpush1.bf16.msra.mxu0 %v203
      %260 = vmatprep.subr.bf16.mxu0 0
      %261 = vmatpush1.bf16.msra.mxu0 %v202
      %262 = vmatprep.subr.bf16.mxu0 0
      %263 = vmatpush1.bf16.msra.mxu0 %v201
      %264 = vmatprep.subr.bf16.mxu0 0
      %265 = vmatpush1.bf16.msra.mxu0 %v200
      %266 = vmatprep.subr.bf16.mxu0 0
      %267 = vmatpush1.bf16.msra.mxu0 %v199
      %268 = vmatprep.subr.bf16.mxu0 0
      %269 = vmatpush1.bf16.msra.mxu0 %v198
      %270 = vmatprep.subr.bf16.mxu0 0
      %271 = vmatpush2.bf16.msra.mxu0 0
      %272 = vmatprep.subr.bf16.mxu0 0
      %273 = vmatpush2.bf16.msra.mxu0 0
      %274 = vmatprep.subr.bf16.mxu0 0
      %275 = vmatpush2.bf16.msra.mxu0 0
      %276 = vmatprep.subr.bf16.mxu0 0
      %277 = vmatpush2.bf16.msra.mxu0 0
      %278 = vmatprep.subr.bf16.mxu0 0
      %279 = vmatpush2.bf16.msra.mxu0 0
      %280 = vmatprep.subr.bf16.mxu0 0
      %281 = vmatpush2.bf16.msra.mxu0 0
      %282 = vmatprep.subr.bf16.mxu0 0
      %283 = vmatpush2.bf16.msra.mxu0 0
      %284 = vmatprep.subr.bf16.mxu0 0
      %285 = vmatpush2.bf16.msra.mxu0 0
      %286 = vmatprep.mubr.bf16.mxu0 0
      %287 = vmatmul.mubr.bf16.gmra.mxu0 %v238
      %v288 = vpop.f32.mrf.mxu0
      %v289 = vadd.f32 %v182, %v288
      %v290 = vpop.f32.mrf.mxu0
      %v291 = vpop.f32.mrf.mxu0
      %v292 = vadd.f32 %v183, %v291
      %v293 = vpop.f32.mrf.mxu0
      %294 = vmatprep.mubr.bf16.mxu0 0
      %295 = vmatmul.mubr.bf16.gmra.mxu0 %v239
      %v296 = vpop.f32.mrf.mxu0
      %v297 = vadd.f32 %v184, %v296
      %v298 = vpop.f32.mrf.mxu0
      %v299 = vpop.f32.mrf.mxu0
      %v300 = vadd.f32 %v185, %v299
      %v301 = vpop.f32.mrf.mxu0
      %302 = vmatprep.mubr.bf16.mxu0 0
      %303 = vmatmul.mubr.bf16.gmra.mxu0 %v240
      %v304 = vpop.f32.mrf.mxu0
      %v305 = vadd.f32 %v186, %v304
      %v306 = vpop.f32.mrf.mxu0
      %v307 = vpop.f32.mrf.mxu0
      %v308 = vadd.f32 %v187, %v307
      %v309 = vpop.f32.mrf.mxu0
      %310 = vmatprep.mubr.bf16.mxu0 0
      %311 = vmatmul.mubr.bf16.gmra.mxu0 %v241
      %v312 = vpop.f32.mrf.mxu0
      %v313 = vadd.f32 %v188, %v312
      %v314 = vpop.f32.mrf.mxu0
      %v315 = vpop.f32.mrf.mxu0
      %v316 = vadd.f32 %v189, %v315
      %v317 = vpop.f32.mrf.mxu0
      %318 = vmatprep.mubr.bf16.mxu0 0
      %319 = vmatmul.mubr.bf16.gmra.mxu0 %v242
      %v320 = vpop.f32.mrf.mxu0
      %v321 = vadd.f32 %v190, %v320
      %v322 = vpop.f32.mrf.mxu0
      %v323 = vpop.f32.mrf.mxu0
      %v324 = vadd.f32 %v191, %v323
      %v325 = vpop.f32.mrf.mxu0
      %326 = vmatprep.mubr.bf16.mxu0 0
      %327 = vmatmul.mubr.bf16.gmra.mxu0 %v243
      %v328 = vpop.f32.mrf.mxu0
      %v329 = vadd.f32 %v192, %v328
      %v330 = vpop.f32.mrf.mxu0
      %v331 = vpop.f32.mrf.mxu0
      %v332 = vadd.f32 %v193, %v331
      %v333 = vpop.f32.mrf.mxu0
      %334 = vmatprep.mubr.bf16.mxu0 0
      %335 = vmatmul.mubr.bf16.gmra.mxu0 %v244
      %v336 = vpop.f32.mrf.mxu0
      %v337 = vadd.f32 %v194, %v336
      %v338 = vpop.f32.mrf.mxu0
      %v339 = vpop.f32.mrf.mxu0
      %v340 = vadd.f32 %v195, %v339
      %v341 = vpop.f32.mrf.mxu0
      %342 = vmatprep.mubr.bf16.mxu0 0
      %343 = vmatmul.mubr.bf16.gmra.mxu0 %v245
      %v344 = vpop.f32.mrf.mxu0
      %v345 = vadd.f32 %v196, %v344
      %v346 = vpop.f32.mrf.mxu0
      %v347 = vpop.f32.mrf.mxu0
      %v348 = vadd.f32 %v197, %v347
      %v349 = vpop.f32.mrf.mxu0
      %350 = vdwg.mxu0
      %v351 = vmax.f32 %v289, 0.0
      %v352 = vmax.f32 %v292, 0.0
      %v353 = vmax.f32 %v297, 0.0
      %v354 = vmax.f32 %v300, 0.0
      %v355 = vmax.f32 %v305, 0.0
      %v356 = vmax.f32 %v308, 0.0
      %v357 = vmax.f32 %v313, 0.0
      %v358 = vmax.f32 %v316, 0.0
      %v359 = vmax.f32 %v321, 0.0
      %v360 = vmax.f32 %v324, 0.0
      %v361 = vmax.f32 %v329, 0.0
      %v362 = vmax.f32 %v332, 0.0
      %v363 = vmax.f32 %v337, 0.0
      %v364 = vmax.f32 %v340, 0.0
      %v365 = vmax.f32 %v345, 0.0
      %v366 = vmax.f32 %v348, 0.0
      %v367 = vpack.c.bf16 %v352, %v351
      %v368 = vpack.c.bf16 %v354, %v353
      %v369 = vpack.c.bf16 %v356, %v355
      %v370 = vpack.c.bf16 %v358, %v357
      %v371 = vpack.c.bf16 %v360, %v359
      %v372 = vpack.c.bf16 %v362, %v361
      %v373 = vpack.c.bf16 %v364, %v363
      %v374 = vpack.c.bf16 %v366, %v365
      %v391 = vunpack.c.l.b16 %v40
      %v392 = vunpack.c.l.b16 %v41
      %v393 = vunpack.c.l.b16 %v42
      %v394 = vunpack.c.l.b16 %v43
      %v395 = vunpack.c.l.b16 %v44
      %v396 = vunpack.c.l.b16 %v45
      %v397 = vunpack.c.l.b16 %v46
      %v398 = vunpack.c.l.b16 %v47
      %v399 = vunpack.c.l.b16 %v48
      %v400 = vunpack.c.l.b16 %v49
      %v401 = vunpack.c.l.b16 %v50
      %v402 = vunpack.c.l.b16 %v51
      %v403 = vunpack.c.l.b16 %v52
      %v404 = vunpack.c.l.b16 %v53
      %v405 = vunpack.c.l.b16 %v54
      %v406 = vunpack.c.l.b16 %v55
      %v407 = vpack.c.b16 %v392, %v391
      %v408 = vpack.c.b16 %v394, %v393
      %v409 = vpack.c.b16 %v396, %v395
      %v410 = vpack.c.b16 %v398, %v397
      %v411 = vpack.c.b16 %v400, %v399
      %v412 = vpack.c.b16 %v402, %v401
      %v413 = vpack.c.b16 %v404, %v403
      %v414 = vpack.c.b16 %v406, %v405
      %423 = vmatprep.subr.bf16.mxu0 0
      %424 = vmatpush1.bf16.msra.mxu0 %v374
      %425 = vmatprep.subr.bf16.mxu0 0
      %426 = vmatpush1.bf16.msra.mxu0 %v373
      %427 = vmatprep.subr.bf16.mxu0 0
      %428 = vmatpush1.bf16.msra.mxu0 %v372
      %429 = vmatprep.subr.bf16.mxu0 0
      %430 = vmatpush1.bf16.msra.mxu0 %v371
      %431 = vmatprep.subr.bf16.mxu0 0
      %432 = vmatpush1.bf16.msra.mxu0 %v370
      %433 = vmatprep.subr.bf16.mxu0 0
      %434 = vmatpush1.bf16.msra.mxu0 %v369
      %435 = vmatprep.subr.bf16.mxu0 0
      %436 = vmatpush1.bf16.msra.mxu0 %v368
      %437 = vmatprep.subr.bf16.mxu0 0
      %438 = vmatpush1.bf16.msra.mxu0 %v367
      %439 = vmatprep.subr.bf16.mxu0 0
      %440 = vmatpush2.bf16.msra.mxu0 0
      %441 = vmatprep.subr.bf16.mxu0 0
      %442 = vmatpush2.bf16.msra.mxu0 0
      %443 = vmatprep.subr.bf16.mxu0 0
      %444 = vmatpush2.bf16.msra.mxu0 0
      %445 = vmatprep.subr.bf16.mxu0 0
      %446 = vmatpush2.bf16.msra.mxu0 0
      %447 = vmatprep.subr.bf16.mxu0 0
      %448 = vmatpush2.bf16.msra.mxu0 0
      %449 = vmatprep.subr.bf16.mxu0 0
      %450 = vmatpush2.bf16.msra.mxu0 0
      %451 = vmatprep.subr.bf16.mxu0 0
      %452 = vmatpush2.bf16.msra.mxu0 0
      %453 = vmatprep.subr.bf16.mxu0 0
      %454 = vmatpush2.bf16.msra.mxu0 0
      %455 = vmatprep.mubr.bf16.mxu0 0
      %456 = vmatmul.mubr.bf16.gmra.mxu0 %v407
      %v457 = vpop.f32.mrf.mxu0
      %v458 = vadd.f32 0.0, %v457
      %v459 = vpop.f32.mrf.mxu0
      %v460 = vpop.f32.mrf.mxu0
      %v461 = vadd.f32 0.0, %v460
      %v462 = vpop.f32.mrf.mxu0
      %463 = vmatprep.mubr.bf16.mxu0 0
      %464 = vmatmul.mubr.bf16.gmra.mxu0 %v408
      %v465 = vpop.f32.mrf.mxu0
      %v466 = vadd.f32 0.0, %v465
      %v467 = vpop.f32.mrf.mxu0
      %v468 = vpop.f32.mrf.mxu0
      %v469 = vadd.f32 0.0, %v468
      %v470 = vpop.f32.mrf.mxu0
      %471 = vmatprep.mubr.bf16.mxu0 0
      %472 = vmatmul.mubr.bf16.gmra.mxu0 %v409
      %v473 = vpop.f32.mrf.mxu0
      %v474 = vadd.f32 0.0, %v473
      %v475 = vpop.f32.mrf.mxu0
      %v476 = vpop.f32.mrf.mxu0
      %v477 = vadd.f32 0.0, %v476
      %v478 = vpop.f32.mrf.mxu0
      %479 = vmatprep.mubr.bf16.mxu0 0
      %480 = vmatmul.mubr.bf16.gmra.mxu0 %v410
      %v481 = vpop.f32.mrf.mxu0
      %v482 = vadd.f32 0.0, %v481
      %v483 = vpop.f32.mrf.mxu0
      %v484 = vpop.f32.mrf.mxu0
      %v485 = vadd.f32 0.0, %v484
      %v486 = vpop.f32.mrf.mxu0
      %487 = vmatprep.mubr.bf16.mxu0 0
      %488 = vmatmul.mubr.bf16.gmra.mxu0 %v411
      %v489 = vpop.f32.mrf.mxu0
      %v490 = vadd.f32 0.0, %v489
      %v491 = vpop.f32.mrf.mxu0
      %v492 = vpop.f32.mrf.mxu0
      %v493 = vadd.f32 0.0, %v492
      %v494 = vpop.f32.mrf.mxu0
      %495 = vmatprep.mubr.bf16.mxu0 0
      %496 = vmatmul.mubr.bf16.gmra.mxu0 %v412
      %v497 = vpop.f32.mrf.mxu0
      %v498 = vadd.f32 0.0, %v497
      %v499 = vpop.f32.mrf.mxu0
      %v500 = vpop.f32.mrf.mxu0
      %v501 = vadd.f32 0.0, %v500
      %v502 = vpop.f32.mrf.mxu0
      %503 = vmatprep.mubr.bf16.mxu0 0
      %504 = vmatmul.mubr.bf16.gmra.mxu0 %v413
      %v505 = vpop.f32.mrf.mxu0
      %v506 = vadd.f32 0.0, %v505
      %v507 = vpop.f32.mrf.mxu0
      %v508 = vpop.f32.mrf.mxu0
      %v509 = vadd.f32 0.0, %v508
      %v510 = vpop.f32.mrf.mxu0
      %511 = vmatprep.mubr.bf16.mxu0 0
      %512 = vmatmul.mubr.bf16.gmra.mxu0 %v414
      %v513 = vpop.f32.mrf.mxu0
      %v514 = vadd.f32 0.0, %v513
      %v515 = vpop.f32.mrf.mxu0
      %v516 = vpop.f32.mrf.mxu0
      %v517 = vadd.f32 0.0, %v516
      %v518 = vpop.f32.mrf.mxu0
      %519 = vdwg.mxu0
      %v520 = vpack.c.bf16 %v461, %v458
      %v521 = vpack.c.bf16 %v469, %v466
      %v522 = vpack.c.bf16 %v477, %v474
      %v523 = vpack.c.bf16 %v485, %v482
      %v524 = vpack.c.bf16 %v493, %v490
      %v525 = vpack.c.bf16 %v501, %v498
      %v526 = vpack.c.bf16 %v509, %v506
      %v527 = vpack.c.bf16 %v517, %v514
      %v528 = vlaneseq
      %v529 = vshrl.u32 %v528, 7
      %v530 = vsub.s32 0, %v529
      %v531 = vrot.slane %v160, %v530
      %v548 = vunpack.c.l.b16 %v117
      %v549 = vunpack.c.l.b16 %v118
      %v550 = vunpack.c.l.b16 %v119
      %v551 = vunpack.c.l.b16 %v120
      %v552 = vunpack.c.l.b16 %v121
      %v553 = vunpack.c.l.b16 %v122
      %v554 = vunpack.c.l.b16 %v123
      %v555 = vunpack.c.l.b16 %v124
      %v556 = vunpack.c.l.b16 %v125
      %v557 = vunpack.c.l.b16 %v126
      %v558 = vunpack.c.l.b16 %v127
      %v559 = vunpack.c.l.b16 %v128
      %v560 = vunpack.c.l.b16 %v129
      %v561 = vunpack.c.l.b16 %v130
      %v562 = vunpack.c.l.b16 %v131
      %v563 = vunpack.c.l.b16 %v132
      %v564 = vpack.c.b16 %v549, %v548
      %v565 = vpack.c.b16 %v551, %v550
      %v566 = vpack.c.b16 %v553, %v552
      %v567 = vpack.c.b16 %v555, %v554
      %v568 = vpack.c.b16 %v557, %v556
      %v569 = vpack.c.b16 %v559, %v558
      %v570 = vpack.c.b16 %v561, %v560
      %v571 = vpack.c.b16 %v563, %v562
      %580 = vmatprep.subr.bf16.mxu0 0
      %581 = vmatpush1.bf16.msra.mxu0 %v571
      %582 = vmatprep.subr.bf16.mxu0 0
      %583 = vmatpush1.bf16.msra.mxu0 %v570
      %584 = vmatprep.subr.bf16.mxu0 0
      %585 = vmatpush1.bf16.msra.mxu0 %v569
      %586 = vmatprep.subr.bf16.mxu0 0
      %587 = vmatpush1.bf16.msra.mxu0 %v568
      %588 = vmatprep.subr.bf16.mxu0 0
      %589 = vmatpush1.bf16.msra.mxu0 %v567
      %590 = vmatprep.subr.bf16.mxu0 0
      %591 = vmatpush1.bf16.msra.mxu0 %v566
      %592 = vmatprep.subr.bf16.mxu0 0
      %593 = vmatpush1.bf16.msra.mxu0 %v565
      %594 = vmatprep.subr.bf16.mxu0 0
      %595 = vmatpush1.bf16.msra.mxu0 %v564
      %596 = vmatprep.subr.bf16.mxu0 0
      %597 = vmatpush2.bf16.msra.mxu0 0
      %598 = vmatprep.subr.bf16.mxu0 0
      %599 = vmatpush2.bf16.msra.mxu0 0
      %600 = vmatprep.subr.bf16.mxu0 0
      %601 = vmatpush2.bf16.msra.mxu0 0
      %602 = vmatprep.subr.bf16.mxu0 0
      %603 = vmatpush2.bf16.msra.mxu0 0
      %604 = vmatprep.subr.bf16.mxu0 0
      %605 = vmatpush2.bf16.msra.mxu0 0
      %606 = vmatprep.subr.bf16.mxu0 0
      %607 = vmatpush2.bf16.msra.mxu0 0
      %608 = vmatprep.subr.bf16.mxu0 0
      %609 = vmatpush2.bf16.msra.mxu0 0
      %610 = vmatprep.subr.bf16.mxu0 0
      %611 = vmatpush2.bf16.msra.mxu0 0
      %612 = vmatprep.mubr.bf16.mxu0 0
      %613 = vmatmul.mubr.bf16.gmra.mxu0 %v520
      %v614 = vpop.f32.mrf.mxu0
      %v615 = vadd.f32 %v531, %v614
      %v616 = vpop.f32.mrf.mxu0
      %v617 = vpop.f32.mrf.mxu0
      %v618 = vadd.f32 %v531, %v617
      %v619 = vpop.f32.mrf.mxu0
      %620 = vmatprep.mubr.bf16.mxu0 0
      %621 = vmatmul.mubr.bf16.gmra.mxu0 %v521
      %v622 = vpop.f32.mrf.mxu0
      %v623 = vadd.f32 %v531, %v622
      %v624 = vpop.f32.mrf.mxu0
      %v625 = vpop.f32.mrf.mxu0
      %v626 = vadd.f32 %v531, %v625
      %v627 = vpop.f32.mrf.mxu0
      %628 = vmatprep.mubr.bf16.mxu0 0
      %629 = vmatmul.mubr.bf16.gmra.mxu0 %v522
      %v630 = vpop.f32.mrf.mxu0
      %v631 = vadd.f32 %v531, %v630
      %v632 = vpop.f32.mrf.mxu0
      %v633 = vpop.f32.mrf.mxu0
      %v634 = vadd.f32 %v531, %v633
      %v635 = vpop.f32.mrf.mxu0
      %636 = vmatprep.mubr.bf16.mxu0 0
      %637 = vmatmul.mubr.bf16.gmra.mxu0 %v523
      %v638 = vpop.f32.mrf.mxu0
      %v639 = vadd.f32 %v531, %v638
      %v640 = vpop.f32.mrf.mxu0
      %v641 = vpop.f32.mrf.mxu0
      %v642 = vadd.f32 %v531, %v641
      %v643 = vpop.f32.mrf.mxu0
      %644 = vmatprep.mubr.bf16.mxu0 0
      %645 = vmatmul.mubr.bf16.gmra.mxu0 %v524
      %v646 = vpop.f32.mrf.mxu0
      %v647 = vadd.f32 %v531, %v646
      %v648 = vpop.f32.mrf.mxu0
      %v649 = vpop.f32.mrf.mxu0
      %v650 = vadd.f32 %v531, %v649
      %v651 = vpop.f32.mrf.mxu0
      %652 = vmatprep.mubr.bf16.mxu0 0
      %653 = vmatmul.mubr.bf16.gmra.mxu0 %v525
      %v654 = vpop.f32.mrf.mxu0
      %v655 = vadd.f32 %v531, %v654
      %v656 = vpop.f32.mrf.mxu0
      %v657 = vpop.f32.mrf.mxu0
      %v658 = vadd.f32 %v531, %v657
      %v659 = vpop.f32.mrf.mxu0
      %660 = vmatprep.mubr.bf16.mxu0 0
      %661 = vmatmul.mubr.bf16.gmra.mxu0 %v526
      %v662 = vpop.f32.mrf.mxu0
      %v663 = vadd.f32 %v531, %v662
      %v664 = vpop.f32.mrf.mxu0
      %v665 = vpop.f32.mrf.mxu0
      %v666 = vadd.f32 %v531, %v665
      %v667 = vpop.f32.mrf.mxu0
      %668 = vmatprep.mubr.bf16.mxu0 0
      %669 = vmatmul.mubr.bf16.gmra.mxu0 %v527
      %v670 = vpop.f32.mrf.mxu0
      %v671 = vadd.f32 %v531, %v670
      %v672 = vpop.f32.mrf.mxu0
      %v673 = vpop.f32.mrf.mxu0
      %v674 = vadd.f32 %v531, %v673
      %v675 = vpop.f32.mrf.mxu0
      %676 = vdwg.mxu0
      %v677 = vmax.f32 %v615, 0.0
      %v678 = vmax.f32 %v618, 0.0
      %v679 = vmax.f32 %v623, 0.0
      %v680 = vmax.f32 %v626, 0.0
      %v681 = vmax.f32 %v631, 0.0
      %v682 = vmax.f32 %v634, 0.0
      %v683 = vmax.f32 %v639, 0.0
      %v684 = vmax.f32 %v642, 0.0
      %v685 = vmax.f32 %v647, 0.0
      %v686 = vmax.f32 %v650, 0.0
      %v687 = vmax.f32 %v655, 0.0
      %v688 = vmax.f32 %v658, 0.0
      %v689 = vmax.f32 %v663, 0.0
      %v690 = vmax.f32 %v666, 0.0
      %v691 = vmax.f32 %v671, 0.0
      %v692 = vmax.f32 %v674, 0.0
      %v693 = vpack.c.bf16 %v678, %v677
      %v694 = vpack.c.bf16 %v680, %v679
      %v695 = vpack.c.bf16 %v682, %v681
      %v696 = vpack.c.bf16 %v684, %v683
      %v697 = vpack.c.bf16 %v686, %v685
      %v698 = vpack.c.bf16 %v688, %v687
      %v699 = vpack.c.bf16 %v690, %v689
      %v700 = vpack.c.bf16 %v692, %v691
      %v701 = vlaneseq
      %v702 = vshrl.u32 %v701, 7
      %v703 = vsub.s32 1, %v702
      %v704 = vrot.slane %v160, %v703
      %v721 = vunpack.c.l.b16 %v138
      %v722 = vunpack.c.l.b16 %v139
      %v723 = vunpack.c.l.b16 %v140
      %v724 = vunpack.c.l.b16 %v141
      %v725 = vunpack.c.l.b16 %v142
      %v726 = vunpack.c.l.b16 %v143
      %v727 = vunpack.c.l.b16 %v144
      %v728 = vunpack.c.l.b16 %v145
      %v729 = vunpack.c.l.b16 %v146
      %v730 = vunpack.c.l.b16 %v147
      %v731 = vunpack.c.l.b16 %v148
      %v732 = vunpack.c.l.b16 %v149
      %v733 = vunpack.c.l.b16 %v150
      %v734 = vunpack.c.l.b16 %v151
      %v735 = vunpack.c.l.b16 %v152
      %v736 = vunpack.c.l.b16 %v153
      %v737 = vpack.c.b16 %v722, %v721
      %v738 = vpack.c.b16 %v724, %v723
      %v739 = vpack.c.b16 %v726, %v725
      %v740 = vpack.c.b16 %v728, %v727
      %v741 = vpack.c.b16 %v730, %v729
      %v742 = vpack.c.b16 %v732, %v731
      %v743 = vpack.c.b16 %v734, %v733
      %v744 = vpack.c.b16 %v736, %v735
      %753 = vmatprep.subr.bf16.mxu0 0
      %754 = vmatpush1.bf16.msra.mxu0 %v744
      %755 = vmatprep.subr.bf16.mxu0 0
      %756 = vmatpush1.bf16.msra.mxu0 %v743
      %757 = vmatprep.subr.bf16.mxu0 0
      %758 = vmatpush1.bf16.msra.mxu0 %v742
      %759 = vmatprep.subr.bf16.mxu0 0
      %760 = vmatpush1.bf16.msra.mxu0 %v741
      %761 = vmatprep.subr.bf16.mxu0 0
      %762 = vmatpush1.bf16.msra.mxu0 %v740
      %763 = vmatprep.subr.bf16.mxu0 0
      %764 = vmatpush1.bf16.msra.mxu0 %v739
      %765 = vmatprep.subr.bf16.mxu0 0
      %766 = vmatpush1.bf16.msra.mxu0 %v738
      %767 = vmatprep.subr.bf16.mxu0 0
      %768 = vmatpush1.bf16.msra.mxu0 %v737
      %769 = vmatprep.subr.bf16.mxu0 0
      %770 = vmatpush2.bf16.msra.mxu0 0
      %771 = vmatprep.subr.bf16.mxu0 0
      %772 = vmatpush2.bf16.msra.mxu0 0
      %773 = vmatprep.subr.bf16.mxu0 0
      %774 = vmatpush2.bf16.msra.mxu0 0
      %775 = vmatprep.subr.bf16.mxu0 0
      %776 = vmatpush2.bf16.msra.mxu0 0
      %777 = vmatprep.subr.bf16.mxu0 0
      %778 = vmatpush2.bf16.msra.mxu0 0
      %779 = vmatprep.subr.bf16.mxu0 0
      %780 = vmatpush2.bf16.msra.mxu0 0
      %781 = vmatprep.subr.bf16.mxu0 0
      %782 = vmatpush2.bf16.msra.mxu0 0
      %783 = vmatprep.subr.bf16.mxu0 0
      %784 = vmatpush2.bf16.msra.mxu0 0
      %785 = vmatprep.mubr.bf16.mxu0 0
      %786 = vmatmul.mubr.bf16.gmra.mxu0 %v693
      %v787 = vpop.f32.mrf.mxu0
      %v788 = vadd.f32 %v704, %v787
      %v789 = vpop.f32.mrf.mxu0
      %v790 = vpop.f32.mrf.mxu0
      %v791 = vadd.f32 %v704, %v790
      %v792 = vpop.f32.mrf.mxu0
      %793 = vmatprep.mubr.bf16.mxu0 0
      %794 = vmatmul.mubr.bf16.gmra.mxu0 %v694
      %v795 = vpop.f32.mrf.mxu0
      %v796 = vadd.f32 %v704, %v795
      %v797 = vpop.f32.mrf.mxu0
      %v798 = vpop.f32.mrf.mxu0
      %v799 = vadd.f32 %v704, %v798
      %v800 = vpop.f32.mrf.mxu0
      %801 = vmatprep.mubr.bf16.mxu0 0
      %802 = vmatmul.mubr.bf16.gmra.mxu0 %v695
      %v803 = vpop.f32.mrf.mxu0
      %v804 = vadd.f32 %v704, %v803
      %v805 = vpop.f32.mrf.mxu0
      %v806 = vpop.f32.mrf.mxu0
      %v807 = vadd.f32 %v704, %v806
      %v808 = vpop.f32.mrf.mxu0
      %809 = vmatprep.mubr.bf16.mxu0 0
      %810 = vmatmul.mubr.bf16.gmra.mxu0 %v696
      %v811 = vpop.f32.mrf.mxu0
      %v812 = vadd.f32 %v704, %v811
      %v813 = vpop.f32.mrf.mxu0
      %v814 = vpop.f32.mrf.mxu0
      %v815 = vadd.f32 %v704, %v814
      %v816 = vpop.f32.mrf.mxu0
      %817 = vmatprep.mubr.bf16.mxu0 0
      %818 = vmatmul.mubr.bf16.gmra.mxu0 %v697
      %v819 = vpop.f32.mrf.mxu0
      %v820 = vadd.f32 %v704, %v819
      %v821 = vpop.f32.mrf.mxu0
      %v822 = vpop.f32.mrf.mxu0
      %v823 = vadd.f32 %v704, %v822
      %v824 = vpop.f32.mrf.mxu0
      %825 = vmatprep.mubr.bf16.mxu0 0
      %826 = vmatmul.mubr.bf16.gmra.mxu0 %v698
      %v827 = vpop.f32.mrf.mxu0
      %v828 = vadd.f32 %v704, %v827
      %v829 = vpop.f32.mrf.mxu0
      %v830 = vpop.f32.mrf.mxu0
      %v831 = vadd.f32 %v704, %v830
      %v832 = vpop.f32.mrf.mxu0
      %833 = vmatprep.mubr.bf16.mxu0 0
      %834 = vmatmul.mubr.bf16.gmra.mxu0 %v699
      %v835 = vpop.f32.mrf.mxu0
      %v836 = vadd.f32 %v704, %v835
      %v837 = vpop.f32.mrf.mxu0
      %v838 = vpop.f32.mrf.mxu0
      %v839 = vadd.f32 %v704, %v838
      %v840 = vpop.f32.mrf.mxu0
      %841 = vmatprep.mubr.bf16.mxu0 0
      %842 = vmatmul.mubr.bf16.gmra.mxu0 %v700
      %v843 = vpop.f32.mrf.mxu0
      %v844 = vadd.f32 %v704, %v843
      %v845 = vpop.f32.mrf.mxu0
      %v846 = vpop.f32.mrf.mxu0
      %v847 = vadd.f32 %v704, %v846
      %v848 = vpop.f32.mrf.mxu0
      %849 = vdwg.mxu0
      %v850 = vlaneseq
      %v851 = vshrl.u32 %v850, 7
      %v852 = vadd.s32 %v851, 8
      %v853 = vadd.s32 %v851, 16
      %v854 = vadd.s32 %v851, 24
      %v855 = vadd.s32 %v851, 32
      %v856 = vadd.s32 %v851, 40
      %v857 = vadd.s32 %v851, 48
      %v858 = vadd.s32 %v851, 56
      %v859 = vadd.s32 %v851, 64
      %v860 = vadd.s32 %v851, 72
      %v861 = vadd.s32 %v851, 80
      %v862 = vadd.s32 %v851, 88
      %v863 = vadd.s32 %v851, 96
      %v864 = vadd.s32 %v851, 104
      %v865 = vadd.s32 %v851, 112
      %v866 = vadd.s32 %v851, 120
      %vm867 = vcmp.lt.s32.totalorder %v851, 16
      %vm868 = vcmp.lt.s32.totalorder %v852, 16
      %vm869 = vcmp.lt.s32.totalorder %v853, 16
      %vm870 = vcmp.lt.s32.totalorder %v854, 16
      %vm871 = vcmp.lt.s32.totalorder %v855, 16
      %vm872 = vcmp.lt.s32.totalorder %v856, 16
      %vm873 = vcmp.lt.s32.totalorder %v857, 16
      %vm874 = vcmp.lt.s32.totalorder %v858, 16
      %vm875 = vcmp.lt.s32.totalorder %v859, 16
      %vm876 = vcmp.lt.s32.totalorder %v860, 16
      %vm877 = vcmp.lt.s32.totalorder %v861, 16
      %vm878 = vcmp.lt.s32.totalorder %v862, 16
      %vm879 = vcmp.lt.s32.totalorder %v863, 16
      %vm880 = vcmp.lt.s32.totalorder %v864, 16
      %vm881 = vcmp.lt.s32.totalorder %v865, 16
      %vm882 = vcmp.lt.s32.totalorder %v866, 16
      %v883 = vsel %vm867, %v788, 0.0
      %v884 = vsel %vm868, %v791, 0.0
      %v885 = vsel %vm869, %v796, 0.0
      %v886 = vsel %vm870, %v799, 0.0
      %v887 = vsel %vm871, %v804, 0.0
      %v888 = vsel %vm872, %v807, 0.0
      %v889 = vsel %vm873, %v812, 0.0
      %v890 = vsel %vm874, %v815, 0.0
      %v891 = vsel %vm875, %v820, 0.0
      %v892 = vsel %vm876, %v823, 0.0
      %v893 = vsel %vm877, %v828, 0.0
      %v894 = vsel %vm878, %v831, 0.0
      %v895 = vsel %vm879, %v836, 0.0
      %v896 = vsel %vm880, %v839, 0.0
      %v897 = vsel %vm881, %v844, 0.0
      %v898 = vsel %vm882, %v847, 0.0
      %v899 = vadd.f32 %v883, %v884
      %v900 = vadd.f32 %v899, %v885
      %v901 = vadd.f32 %v900, %v886
      %v902 = vadd.f32 %v901, %v887
      %v903 = vadd.f32 %v902, %v888
      %v904 = vadd.f32 %v903, %v889
      %v905 = vadd.f32 %v904, %v890
      %v906 = vadd.f32 %v905, %v891
      %v907 = vadd.f32 %v906, %v892
      %v908 = vadd.f32 %v907, %v893
      %v909 = vadd.f32 %v908, %v894
      %v910 = vadd.f32 %v909, %v895
      %v911 = vadd.f32 %v910, %v896
      %v912 = vadd.f32 %v911, %v897
      %v913 = vadd.f32 %v912, %v898
      %v914 = vrot.slane %v913, 4
      %v915 = vadd.f32 %v913, %v914
      %v916 = vrot.slane %v915, 2
      %v917 = vadd.f32 %v915, %v916
      %v918 = vrot.slane %v917, 1
      %v919 = vadd.f32 %v917, %v918
      %v920 = vmul.f32 %v919, 0.0625
      %v921 = vmul.f32 %v883, %v788
      %v922 = vmul.f32 %v884, %v791
      %v923 = vmul.f32 %v885, %v796
      %v924 = vmul.f32 %v886, %v799
      %v925 = vmul.f32 %v887, %v804
      %v926 = vmul.f32 %v888, %v807
      %v927 = vmul.f32 %v889, %v812
      %v928 = vmul.f32 %v890, %v815
      %v929 = vmul.f32 %v891, %v820
      %v930 = vmul.f32 %v892, %v823
      %v931 = vmul.f32 %v893, %v828
      %v932 = vmul.f32 %v894, %v831
      %v933 = vmul.f32 %v895, %v836
      %v934 = vmul.f32 %v896, %v839
      %v935 = vmul.f32 %v897, %v844
      %v936 = vmul.f32 %v898, %v847
      %v937 = vadd.f32 %v921, %v922
      %v938 = vadd.f32 %v937, %v923
      %v939 = vadd.f32 %v938, %v924
      %v940 = vadd.f32 %v939, %v925
      %v941 = vadd.f32 %v940, %v926
      %v942 = vadd.f32 %v941, %v927
      %v943 = vadd.f32 %v942, %v928
      %v944 = vadd.f32 %v943, %v929
      %v945 = vadd.f32 %v944, %v930
      %v946 = vadd.f32 %v945, %v931
      %v947 = vadd.f32 %v946, %v932
      %v948 = vadd.f32 %v947, %v933
      %v949 = vadd.f32 %v948, %v934
      %v950 = vadd.f32 %v949, %v935
      %v951 = vadd.f32 %v950, %v936
      %v952 = vrot.slane %v951, 4
      %v953 = vadd.f32 %v951, %v952
      %v954 = vrot.slane %v953, 2
      %v955 = vadd.f32 %v953, %v954
      %v956 = vrot.slane %v955, 1
      %v957 = vadd.f32 %v955, %v956
      %v958 = vmul.f32 %v957, 0.0625
      %v959 = vmul.f32 %v920, %v920
      %v960 = vsub.f32 %v958, %v959
      %v961 = vmax.f32 %v960, 0.0
      %v962 = vadd.f32 %v961, 1e-05
      %v963 = vrsqrt.pop %v962
      %v964 = vmul.f32 %v963, %v160
      %v965 = vsub.f32 %v788, %v920
      %v966 = vsub.f32 %v791, %v920
      %v967 = vsub.f32 %v796, %v920
      %v968 = vsub.f32 %v799, %v920
      %v969 = vsub.f32 %v804, %v920
      %v970 = vsub.f32 %v807, %v920
      %v971 = vsub.f32 %v812, %v920
      %v972 = vsub.f32 %v815, %v920
      %v973 = vsub.f32 %v820, %v920
      %v974 = vsub.f32 %v823, %v920
      %v975 = vsub.f32 %v828, %v920
      %v976 = vsub.f32 %v831, %v920
      %v977 = vsub.f32 %v836, %v920
      %v978 = vsub.f32 %v839, %v920
      %v979 = vsub.f32 %v844, %v920
      %v980 = vsub.f32 %v847, %v920
      %v981 = vlaneseq
      %v982 = vshrl.u32 %v981, 7
      %v983 = vsub.s32 2, %v982
      %v984 = vrot.slane %v964, %v983
      %v985 = vmul.f32 %v965, %v984
      %v986 = vmul.f32 %v966, %v984
      %v987 = vmul.f32 %v967, %v984
      %v988 = vmul.f32 %v968, %v984
      %v989 = vmul.f32 %v969, %v984
      %v990 = vmul.f32 %v970, %v984
      %v991 = vmul.f32 %v971, %v984
      %v992 = vmul.f32 %v972, %v984
      %v993 = vmul.f32 %v973, %v984
      %v994 = vmul.f32 %v974, %v984
      %v995 = vmul.f32 %v975, %v984
      %v996 = vmul.f32 %v976, %v984
      %v997 = vmul.f32 %v977, %v984
      %v998 = vmul.f32 %v978, %v984
      %v999 = vmul.f32 %v979, %v984
      %v1000 = vmul.f32 %v980, %v984
      %v1001 = vlaneseq
      %v1002 = vshrl.u32 %v1001, 7
      %v1003 = vsub.s32 3, %v1002
      %v1004 = vrot.slane %v160, %v1003
      %v1005 = vadd.f32 %v985, %v1004
      %v1006 = vadd.f32 %v986, %v1004
      %v1007 = vadd.f32 %v987, %v1004
      %v1008 = vadd.f32 %v988, %v1004
      %v1009 = vadd.f32 %v989, %v1004
      %v1010 = vadd.f32 %v990, %v1004
      %v1011 = vadd.f32 %v991, %v1004
      %v1012 = vadd.f32 %v992, %v1004
      %v1013 = vadd.f32 %v993, %v1004
      %v1014 = vadd.f32 %v994, %v1004
      %v1015 = vadd.f32 %v995, %v1004
      %v1016 = vadd.f32 %v996, %v1004
      %v1017 = vadd.f32 %v997, %v1004
      %v1018 = vadd.f32 %v998, %v1004
      %v1019 = vadd.f32 %v999, %v1004
      %v1020 = vadd.f32 %v1000, %v1004
      %v1021 = vmax.f32 %v1005, 0.0
      %v1022 = vmax.f32 %v1006, 0.0
      %v1023 = vmax.f32 %v1007, 0.0
      %v1024 = vmax.f32 %v1008, 0.0
      %v1025 = vmax.f32 %v1009, 0.0
      %v1026 = vmax.f32 %v1010, 0.0
      %v1027 = vmax.f32 %v1011, 0.0
      %v1028 = vmax.f32 %v1012, 0.0
      %v1029 = vmax.f32 %v1013, 0.0
      %v1030 = vmax.f32 %v1014, 0.0
      %v1031 = vmax.f32 %v1015, 0.0
      %v1032 = vmax.f32 %v1016, 0.0
      %v1033 = vmax.f32 %v1017, 0.0
      %v1034 = vmax.f32 %v1018, 0.0
      %v1035 = vmax.f32 %v1019, 0.0
      %v1036 = vmax.f32 %v1020, 0.0
    $region14: #{tpu_custom_call.1} parent=1 // loop_footer
      %s94 = sadd.s32 1, %s90
    $region15: #{tpu_custom_call.1} parent=1 // loop_footer_branch
      %89 = sbr.rel target = $region11
    $region16: #{tpu_custom_call.1} parent=1 // loop_exit
      _
    %v1037 = vld [vmem:[#allocation2 + $0x3e8] sm:$0xf]
    %v1038 = vld [vmem:[#allocation2 + $0x3ec] sm:$0xf]
    %v1039 = vld [vmem:[#allocation2 + $0x3f0] sm:$0xf]
    %v1040 = vld [vmem:[#allocation2 + $0x3f4] sm:$0xf]
    %v1041 = vld [vmem:[#allocation2 + $0x3f8] sm:$0xf]
    %v1042 = vld [vmem:[#allocation2 + $0x3fc] sm:$0xf]
    %v1043 = vld [vmem:[#allocation2 + $0x400] sm:$0xf]
    %v1044 = vld [vmem:[#allocation2 + $0x404] sm:$0xf]
    %v1045 = vld [vmem:[#allocation2 + $0x408] sm:$0xf]
    %v1046 = vld [vmem:[#allocation2 + $0x40c] sm:$0xf]
    %v1047 = vld [vmem:[#allocation2 + $0x410] sm:$0xf]
    %v1048 = vld [vmem:[#allocation2 + $0x414] sm:$0xf]
    %v1049 = vld [vmem:[#allocation2 + $0x418] sm:$0xf]
    %v1050 = vld [vmem:[#allocation2 + $0x41c] sm:$0xf]
    %v1051 = vld [vmem:[#allocation2 + $0x420] sm:$0xf]
    %v1052 = vld [vmem:[#allocation2 + $0x424] sm:$0xf]
    %v1053 = vld [vmem:[#allocation2 + $0x428] sm:$0xf]
    %v1054 = vld [vmem:[#allocation2 + $0x42c] sm:$0xf]
    %v1055 = vld [vmem:[#allocation2 + $0x430] sm:$0xf]
    %v1056 = vld [vmem:[#allocation2 + $0x434] sm:$0xf]
    %v1057 = vld [vmem:[#allocation2 + $0x438] sm:$0xf]
    %v1058 = vld [vmem:[#allocation2 + $0x43c] sm:$0xf]
    %v1059 = vld [vmem:[#allocation2 + $0x440] sm:$0xf]
    %v1060 = vld [vmem:[#allocation2 + $0x444] sm:$0xf]
    %v1061 = vld [vmem:[#allocation2 + $0x448] sm:$0xf]
    %v1062 = vld [vmem:[#allocation2 + $0x44c] sm:$0xf]
    %v1063 = vld [vmem:[#allocation2 + $0x450] sm:$0xf]
    %v1064 = vld [vmem:[#allocation2 + $0x454] sm:$0xf]
    %v1065 = vld [vmem:[#allocation2 + $0x458] sm:$0xf]
    %v1066 = vld [vmem:[#allocation2 + $0x45c] sm:$0xf]
    %v1067 = vld [vmem:[#allocation2 + $0x460] sm:$0xf]
    %v1068 = vld [vmem:[#allocation2 + $0x464] sm:$0xf]
    %v1069 = vld [vmem:[#allocation2 + $0x468] sm:$0xf]
    %v1070 = vunpack.c.l.bf16 %v1069
    %v1071 = vld [vmem:[#allocation2 + $0x470] sm:$0xf]
    %v1072 = vld [vmem:[#allocation2 + $0x474] sm:$0xf]
    %v1073 = vld [vmem:[#allocation2 + $0x478] sm:$0xf]
    %v1074 = vld [vmem:[#allocation2 + $0x47c] sm:$0xf]
    %v1075 = vld [vmem:[#allocation2 + $0x480] sm:$0xf]
    %v1076 = vld [vmem:[#allocation2 + $0x484] sm:$0xf]
    %v1077 = vld [vmem:[#allocation2 + $0x488] sm:$0xf]
    %v1078 = vld [vmem:[#allocation2 + $0x48c] sm:$0xf]
    %v1079 = vld [vmem:[#allocation2 + $0x490] sm:$0xf]
    %v1080 = vld [vmem:[#allocation2 + $0x494] sm:$0xf]
    %v1081 = vld [vmem:[#allocation2 + $0x498] sm:$0xf]
    %v1082 = vld [vmem:[#allocation2 + $0x49c] sm:$0xf]
    %v1083 = vld [vmem:[#allocation2 + $0x4a0] sm:$0xf]
    %v1084 = vld [vmem:[#allocation2 + $0x4a4] sm:$0xf]
    %v1085 = vld [vmem:[#allocation2 + $0x4a8] sm:$0xf]
    %v1086 = vld [vmem:[#allocation2 + $0x4ac] sm:$0xf]
    %v1087 = vunpack.c.l.bf16 %v1071
    %v1088 = vunpack.c.l.bf16 %v1072
    %v1089 = vunpack.c.l.bf16 %v1073
    %v1090 = vunpack.c.l.bf16 %v1074
    %v1091 = vunpack.c.l.bf16 %v1075
    %v1092 = vunpack.c.l.bf16 %v1076
    %v1093 = vunpack.c.l.bf16 %v1077
    %v1094 = vunpack.c.l.bf16 %v1078
    %v1095 = vunpack.c.l.bf16 %v1079
    %v1096 = vunpack.c.l.bf16 %v1080
    %v1097 = vunpack.c.l.bf16 %v1081
    %v1098 = vunpack.c.l.bf16 %v1082
    %v1099 = vunpack.c.l.bf16 %v1083
    %v1100 = vunpack.c.l.bf16 %v1084
    %v1101 = vunpack.c.l.bf16 %v1085
    %v1102 = vunpack.c.l.bf16 %v1086
    %v1103 = vpack.c.bf16 %v96, %v95
    %v1104 = vpack.c.bf16 %v98, %v97
    %v1105 = vpack.c.bf16 %v100, %v99
    %v1106 = vpack.c.bf16 %v102, %v101
    %v1107 = vpack.c.bf16 %v104, %v103
    %v1108 = vpack.c.bf16 %v106, %v105
    %v1109 = vpack.c.bf16 %v108, %v107
    %v1110 = vpack.c.bf16 %v110, %v109
    %v1127 = vunpack.c.l.b16 %v24
    %v1128 = vunpack.c.l.b16 %v25
    %v1129 = vunpack.c.l.b16 %v26
    %v1130 = vunpack.c.l.b16 %v27
    %v1131 = vunpack.c.l.b16 %v28
    %v1132 = vunpack.c.l.b16 %v29
    %v1133 = vunpack.c.l.b16 %v30
    %v1134 = vunpack.c.l.b16 %v31
    %v1135 = vunpack.c.l.b16 %v32
    %v1136 = vunpack.c.l.b16 %v33
    %v1137 = vunpack.c.l.b16 %v34
    %v1138 = vunpack.c.l.b16 %v35
    %v1139 = vunpack.c.l.b16 %v36
    %v1140 = vunpack.c.l.b16 %v37
    %v1141 = vunpack.c.l.b16 %v38
    %v1142 = vunpack.c.l.b16 %v39
    %v1143 = vpack.c.b16 %v1128, %v1127
    %v1144 = vpack.c.b16 %v1130, %v1129
    %v1145 = vpack.c.b16 %v1132, %v1131
    %v1146 = vpack.c.b16 %v1134, %v1133
    %v1147 = vpack.c.b16 %v1136, %v1135
    %v1148 = vpack.c.b16 %v1138, %v1137
    %v1149 = vpack.c.b16 %v1140, %v1139
    %v1150 = vpack.c.b16 %v1142, %v1141
    %1159 = vmatprep.subr.bf16.mxu0 0
    %1160 = vmatpush1.bf16.msra.mxu0 %v1110
    %1161 = vmatprep.subr.bf16.mxu0 0
    %1162 = vmatpush1.bf16.msra.mxu0 %v1109
    %1163 = vmatprep.subr.bf16.mxu0 0
    %1164 = vmatpush1.bf16.msra.mxu0 %v1108
    %1165 = vmatprep.subr.bf16.mxu0 0
    %1166 = vmatpush1.bf16.msra.mxu0 %v1107
    %1167 = vmatprep.subr.bf16.mxu0 0
    %1168 = vmatpush1.bf16.msra.mxu0 %v1106
    %1169 = vmatprep.subr.bf16.mxu0 0
    %1170 = vmatpush1.bf16.msra.mxu0 %v1105
    %1171 = vmatprep.subr.bf16.mxu0 0
    %1172 = vmatpush1.bf16.msra.mxu0 %v1104
    %1173 = vmatprep.subr.bf16.mxu0 0
    %1174 = vmatpush1.bf16.msra.mxu0 %v1103
    %1175 = vmatprep.subr.bf16.mxu0 0
    %1176 = vmatpush2.bf16.msra.mxu0 0
    %1177 = vmatprep.subr.bf16.mxu0 0
    %1178 = vmatpush2.bf16.msra.mxu0 0
    %1179 = vmatprep.subr.bf16.mxu0 0
    %1180 = vmatpush2.bf16.msra.mxu0 0
    %1181 = vmatprep.subr.bf16.mxu0 0
    %1182 = vmatpush2.bf16.msra.mxu0 0
    %1183 = vmatprep.subr.bf16.mxu0 0
    %1184 = vmatpush2.bf16.msra.mxu0 0
    %1185 = vmatprep.subr.bf16.mxu0 0
    %1186 = vmatpush2.bf16.msra.mxu0 0
    %1187 = vmatprep.subr.bf16.mxu0 0
    %1188 = vmatpush2.bf16.msra.mxu0 0
    %1189 = vmatprep.subr.bf16.mxu0 0
    %1190 = vmatpush2.bf16.msra.mxu0 0
    %1191 = vmatprep.mubr.bf16.mxu0 0
    %1192 = vmatmul.mubr.bf16.gmra.mxu0 %v1143
    %v1193 = vpop.f32.mrf.mxu0
    %v1194 = vadd.f32 %v1087, %v1193
    %v1195 = vpop.f32.mrf.mxu0
    %v1196 = vpop.f32.mrf.mxu0
    %v1197 = vadd.f32 %v1088, %v1196
    %v1198 = vpop.f32.mrf.mxu0
    %1199 = vmatprep.mubr.bf16.mxu0 0
    %1200 = vmatmul.mubr.bf16.gmra.mxu0 %v1144
    %v1201 = vpop.f32.mrf.mxu0
    %v1202 = vadd.f32 %v1089, %v1201
    %v1203 = vpop.f32.mrf.mxu0
    %v1204 = vpop.f32.mrf.mxu0
    %v1205 = vadd.f32 %v1090, %v1204
    %v1206 = vpop.f32.mrf.mxu0
    %1207 = vmatprep.mubr.bf16.mxu0 0
    %1208 = vmatmul.mubr.bf16.gmra.mxu0 %v1145
    %v1209 = vpop.f32.mrf.mxu0
    %v1210 = vadd.f32 %v1091, %v1209
    %v1211 = vpop.f32.mrf.mxu0
    %v1212 = vpop.f32.mrf.mxu0
    %v1213 = vadd.f32 %v1092, %v1212
    %v1214 = vpop.f32.mrf.mxu0
    %1215 = vmatprep.mubr.bf16.mxu0 0
    %1216 = vmatmul.mubr.bf16.gmra.mxu0 %v1146
    %v1217 = vpop.f32.mrf.mxu0
    %v1218 = vadd.f32 %v1093, %v1217
    %v1219 = vpop.f32.mrf.mxu0
    %v1220 = vpop.f32.mrf.mxu0
    %v1221 = vadd.f32 %v1094, %v1220
    %v1222 = vpop.f32.mrf.mxu0
    %1223 = vmatprep.mubr.bf16.mxu0 0
    %1224 = vmatmul.mubr.bf16.gmra.mxu0 %v1147
    %v1225 = vpop.f32.mrf.mxu0
    %v1226 = vadd.f32 %v1095, %v1225
    %v1227 = vpop.f32.mrf.mxu0
    %v1228 = vpop.f32.mrf.mxu0
    %v1229 = vadd.f32 %v1096, %v1228
    %v1230 = vpop.f32.mrf.mxu0
    %1231 = vmatprep.mubr.bf16.mxu0 0
    %1232 = vmatmul.mubr.bf16.gmra.mxu0 %v1148
    %v1233 = vpop.f32.mrf.mxu0
    %v1234 = vadd.f32 %v1097, %v1233
    %v1235 = vpop.f32.mrf.mxu0
    %v1236 = vpop.f32.mrf.mxu0
    %v1237 = vadd.f32 %v1098, %v1236
    %v1238 = vpop.f32.mrf.mxu0
    %1239 = vmatprep.mubr.bf16.mxu0 0
    %1240 = vmatmul.mubr.bf16.gmra.mxu0 %v1149
    %v1241 = vpop.f32.mrf.mxu0
    %v1242 = vadd.f32 %v1099, %v1241
    %v1243 = vpop.f32.mrf.mxu0
    %v1244 = vpop.f32.mrf.mxu0
    %v1245 = vadd.f32 %v1100, %v1244
    %v1246 = vpop.f32.mrf.mxu0
    %1247 = vmatprep.mubr.bf16.mxu0 0
    %1248 = vmatmul.mubr.bf16.gmra.mxu0 %v1150
    %v1249 = vpop.f32.mrf.mxu0
    %v1250 = vadd.f32 %v1101, %v1249
    %v1251 = vpop.f32.mrf.mxu0
    %v1252 = vpop.f32.mrf.mxu0
    %v1253 = vadd.f32 %v1102, %v1252
    %v1254 = vpop.f32.mrf.mxu0
    %1255 = vdwg.mxu0
    %v1256 = vmax.f32 %v1194, 0.0
    %v1257 = vmax.f32 %v1197, 0.0
    %v1258 = vmax.f32 %v1202, 0.0
    %v1259 = vmax.f32 %v1205, 0.0
    %v1260 = vmax.f32 %v1210, 0.0
    %v1261 = vmax.f32 %v1213, 0.0
    %v1262 = vmax.f32 %v1218, 0.0
    %v1263 = vmax.f32 %v1221, 0.0
    %v1264 = vmax.f32 %v1226, 0.0
    %v1265 = vmax.f32 %v1229, 0.0
    %v1266 = vmax.f32 %v1234, 0.0
    %v1267 = vmax.f32 %v1237, 0.0
    %v1268 = vmax.f32 %v1242, 0.0
    %v1269 = vmax.f32 %v1245, 0.0
    %v1270 = vmax.f32 %v1250, 0.0
    %v1271 = vmax.f32 %v1253, 0.0
    %v1272 = vpack.c.bf16 %v1257, %v1256
    %v1273 = vpack.c.bf16 %v1259, %v1258
    %v1274 = vpack.c.bf16 %v1261, %v1260
    %v1275 = vpack.c.bf16 %v1263, %v1262
    %v1276 = vpack.c.bf16 %v1265, %v1264
    %v1277 = vpack.c.bf16 %v1267, %v1266
    %v1278 = vpack.c.bf16 %v1269, %v1268
    %v1279 = vpack.c.bf16 %v1271, %v1270
    %v1296 = vunpack.c.l.b16 %v40
    %v1297 = vunpack.c.l.b16 %v41
    %v1298 = vunpack.c.l.b16 %v42
    %v1299 = vunpack.c.l.b16 %v43
    %v1300 = vunpack.c.l.b16 %v44
    %v1301 = vunpack.c.l.b16 %v45
    %v1302 = vunpack.c.l.b16 %v46
    %v1303 = vunpack.c.l.b16 %v47
    %v1304 = vunpack.c.l.b16 %v48
    %v1305 = vunpack.c.l.b16 %v49
    %v1306 = vunpack.c.l.b16 %v50
    %v1307 = vunpack.c.l.b16 %v51
    %v1308 = vunpack.c.l.b16 %v52
    %v1309 = vunpack.c.l.b16 %v53
    %v1310 = vunpack.c.l.b16 %v54
    %v1311 = vunpack.c.l.b16 %v55
    %v1312 = vpack.c.b16 %v1297, %v1296
    %v1313 = vpack.c.b16 %v1299, %v1298
    %v1314 = vpack.c.b16 %v1301, %v1300
    %v1315 = vpack.c.b16 %v1303, %v1302
    %v1316 = vpack.c.b16 %v1305, %v1304
    %v1317 = vpack.c.b16 %v1307, %v1306
    %v1318 = vpack.c.b16 %v1309, %v1308
    %v1319 = vpack.c.b16 %v1311, %v1310
    %1328 = vmatprep.subr.bf16.mxu0 0
    %1329 = vmatpush1.bf16.msra.mxu0 %v1279
    %1330 = vmatprep.subr.bf16.mxu0 0
    %1331 = vmatpush1.bf16.msra.mxu0 %v1278
    %1332 = vmatprep.subr.bf16.mxu0 0
    %1333 = vmatpush1.bf16.msra.mxu0 %v1277
    %1334 = vmatprep.subr.bf16.mxu0 0
    %1335 = vmatpush1.bf16.msra.mxu0 %v1276
    %1336 = vmatprep.subr.bf16.mxu0 0
    %1337 = vmatpush1.bf16.msra.mxu0 %v1275
    %1338 = vmatprep.subr.bf16.mxu0 0
    %1339 = vmatpush1.bf16.msra.mxu0 %v1274
    %1340 = vmatprep.subr.bf16.mxu0 0
    %1341 = vmatpush1.bf16.msra.mxu0 %v1273
    %1342 = vmatprep.subr.bf16.mxu0 0
    %1343 = vmatpush1.bf16.msra.mxu0 %v1272
    %1344 = vmatprep.subr.bf16.mxu0 0
    %1345 = vmatpush2.bf16.msra.mxu0 0
    %1346 = vmatprep.subr.bf16.mxu0 0
    %1347 = vmatpush2.bf16.msra.mxu0 0
    %1348 = vmatprep.subr.bf16.mxu0 0
    %1349 = vmatpush2.bf16.msra.mxu0 0
    %1350 = vmatprep.subr.bf16.mxu0 0
    %1351 = vmatpush2.bf16.msra.mxu0 0
    %1352 = vmatprep.subr.bf16.mxu0 0
    %1353 = vmatpush2.bf16.msra.mxu0 0
    %1354 = vmatprep.subr.bf16.mxu0 0
    %1355 = vmatpush2.bf16.msra.mxu0 0
    %1356 = vmatprep.subr.bf16.mxu0 0
    %1357 = vmatpush2.bf16.msra.mxu0 0
    %1358 = vmatprep.subr.bf16.mxu0 0
    %1359 = vmatpush2.bf16.msra.mxu0 0
    %1360 = vmatprep.mubr.bf16.mxu0 0
    %1361 = vmatmul.mubr.bf16.gmra.mxu0 %v1312
    %v1362 = vpop.f32.mrf.mxu0
    %v1363 = vadd.f32 0.0, %v1362
    %v1364 = vpop.f32.mrf.mxu0
    %v1365 = vpop.f32.mrf.mxu0
    %v1366 = vadd.f32 0.0, %v1365
    %v1367 = vpop.f32.mrf.mxu0
    %1368 = vmatprep.mubr.bf16.mxu0 0
    %1369 = vmatmul.mubr.bf16.gmra.mxu0 %v1313
    %v1370 = vpop.f32.mrf.mxu0
    %v1371 = vadd.f32 0.0, %v1370
    %v1372 = vpop.f32.mrf.mxu0
    %v1373 = vpop.f32.mrf.mxu0
    %v1374 = vadd.f32 0.0, %v1373
    %v1375 = vpop.f32.mrf.mxu0
    %1376 = vmatprep.mubr.bf16.mxu0 0
    %1377 = vmatmul.mubr.bf16.gmra.mxu0 %v1314
    %v1378 = vpop.f32.mrf.mxu0
    %v1379 = vadd.f32 0.0, %v1378
    %v1380 = vpop.f32.mrf.mxu0
    %v1381 = vpop.f32.mrf.mxu0
    %v1382 = vadd.f32 0.0, %v1381
    %v1383 = vpop.f32.mrf.mxu0
    %1384 = vmatprep.mubr.bf16.mxu0 0
    %1385 = vmatmul.mubr.bf16.gmra.mxu0 %v1315
    %v1386 = vpop.f32.mrf.mxu0
    %v1387 = vadd.f32 0.0, %v1386
    %v1388 = vpop.f32.mrf.mxu0
    %v1389 = vpop.f32.mrf.mxu0
    %v1390 = vadd.f32 0.0, %v1389
    %v1391 = vpop.f32.mrf.mxu0
    %1392 = vmatprep.mubr.bf16.mxu0 0
    %1393 = vmatmul.mubr.bf16.gmra.mxu0 %v1316
    %v1394 = vpop.f32.mrf.mxu0
    %v1395 = vadd.f32 0.0, %v1394
    %v1396 = vpop.f32.mrf.mxu0
    %v1397 = vpop.f32.mrf.mxu0
    %v1398 = vadd.f32 0.0, %v1397
    %v1399 = vpop.f32.mrf.mxu0
    %1400 = vmatprep.mubr.bf16.mxu0 0
    %1401 = vmatmul.mubr.bf16.gmra.mxu0 %v1317
    %v1402 = vpop.f32.mrf.mxu0
    %v1403 = vadd.f32 0.0, %v1402
    %v1404 = vpop.f32.mrf.mxu0
    %v1405 = vpop.f32.mrf.mxu0
    %v1406 = vadd.f32 0.0, %v1405
    %v1407 = vpop.f32.mrf.mxu0
    %1408 = vmatprep.mubr.bf16.mxu0 0
    %1409 = vmatmul.mubr.bf16.gmra.mxu0 %v1318
    %v1410 = vpop.f32.mrf.mxu0
    %v1411 = vadd.f32 0.0, %v1410
    %v1412 = vpop.f32.mrf.mxu0
    %v1413 = vpop.f32.mrf.mxu0
    %v1414 = vadd.f32 0.0, %v1413
    %v1415 = vpop.f32.mrf.mxu0
    %1416 = vmatprep.mubr.bf16.mxu0 0
    %1417 = vmatmul.mubr.bf16.gmra.mxu0 %v1319
    %v1418 = vpop.f32.mrf.mxu0
    %v1419 = vadd.f32 0.0, %v1418
    %v1420 = vpop.f32.mrf.mxu0
    %v1421 = vpop.f32.mrf.mxu0
    %v1422 = vadd.f32 0.0, %v1421
    %v1423 = vpop.f32.mrf.mxu0
    %1424 = vdwg.mxu0
    %v1425 = vpack.c.bf16 %v1366, %v1363
    %v1426 = vpack.c.bf16 %v1374, %v1371
    %v1427 = vpack.c.bf16 %v1382, %v1379
    %v1428 = vpack.c.bf16 %v1390, %v1387
    %v1429 = vpack.c.bf16 %v1398, %v1395
    %v1430 = vpack.c.bf16 %v1406, %v1403
    %v1431 = vpack.c.bf16 %v1414, %v1411
    %v1432 = vpack.c.bf16 %v1422, %v1419
    %v1433 = vlaneseq
    %v1434 = vshrl.u32 %v1433, 7
    %v1435 = vsub.s32 0, %v1434
    %v1436 = vrot.slane %v1070, %v1435
    %v1453 = vunpack.c.l.b16 %v1037
    %v1454 = vunpack.c.l.b16 %v1038
    %v1455 = vunpack.c.l.b16 %v1039
    %v1456 = vunpack.c.l.b16 %v1040
    %v1457 = vunpack.c.l.b16 %v1041
    %v1458 = vunpack.c.l.b16 %v1042
    %v1459 = vunpack.c.l.b16 %v1043
    %v1460 = vunpack.c.l.b16 %v1044
    %v1461 = vunpack.c.l.b16 %v1045
    %v1462 = vunpack.c.l.b16 %v1046
    %v1463 = vunpack.c.l.b16 %v1047
    %v1464 = vunpack.c.l.b16 %v1048
    %v1465 = vunpack.c.l.b16 %v1049
    %v1466 = vunpack.c.l.b16 %v1050
    %v1467 = vunpack.c.l.b16 %v1051
    %v1468 = vunpack.c.l.b16 %v1052
    %v1469 = vpack.c.b16 %v1454, %v1453
    %v1470 = vpack.c.b16 %v1456, %v1455
    %v1471 = vpack.c.b16 %v1458, %v1457
    %v1472 = vpack.c.b16 %v1460, %v1459
    %v1473 = vpack.c.b16 %v1462, %v1461
    %v1474 = vpack.c.b16 %v1464, %v1463
    %v1475 = vpack.c.b16 %v1466, %v1465
    %v1476 = vpack.c.b16 %v1468, %v1467
    %1485 = vmatprep.subr.bf16.mxu0 0
    %1486 = vmatpush1.bf16.msra.mxu0 %v1476
    %1487 = vmatprep.subr.bf16.mxu0 0
    %1488 = vmatpush1.bf16.msra.mxu0 %v1475
    %1489 = vmatprep.subr.bf16.mxu0 0
    %1490 = vmatpush1.bf16.msra.mxu0 %v1474
    %1491 = vmatprep.subr.bf16.mxu0 0
    %1492 = vmatpush1.bf16.msra.mxu0 %v1473
    %1493 = vmatprep.subr.bf16.mxu0 0
    %1494 = vmatpush1.bf16.msra.mxu0 %v1472
    %1495 = vmatprep.subr.bf16.mxu0 0
    %1496 = vmatpush1.bf16.msra.mxu0 %v1471
    %1497 = vmatprep.subr.bf16.mxu0 0
    %1498 = vmatpush1.bf16.msra.mxu0 %v1470
    %1499 = vmatprep.subr.bf16.mxu0 0
    %1500 = vmatpush1.bf16.msra.mxu0 %v1469
    %1501 = vmatprep.subr.bf16.mxu0 0
    %1502 = vmatpush2.bf16.msra.mxu0 0
    %1503 = vmatprep.subr.bf16.mxu0 0
    %1504 = vmatpush2.bf16.msra.mxu0 0
    %1505 = vmatprep.subr.bf16.mxu0 0
    %1506 = vmatpush2.bf16.msra.mxu0 0
    %1507 = vmatprep.subr.bf16.mxu0 0
    %1508 = vmatpush2.bf16.msra.mxu0 0
    %1509 = vmatprep.subr.bf16.mxu0 0
    %1510 = vmatpush2.bf16.msra.mxu0 0
    %1511 = vmatprep.subr.bf16.mxu0 0
    %1512 = vmatpush2.bf16.msra.mxu0 0
    %1513 = vmatprep.subr.bf16.mxu0 0
    %1514 = vmatpush2.bf16.msra.mxu0 0
    %1515 = vmatprep.subr.bf16.mxu0 0
    %1516 = vmatpush2.bf16.msra.mxu0 0
    %1517 = vmatprep.mubr.bf16.mxu0 0
    %1518 = vmatmul.mubr.bf16.gmra.mxu0 %v1425
    %v1519 = vpop.f32.mrf.mxu0
    %v1520 = vadd.f32 %v1436, %v1519
    %v1521 = vpop.f32.mrf.mxu0
    %v1522 = vpop.f32.mrf.mxu0
    %v1523 = vadd.f32 %v1436, %v1522
    %v1524 = vpop.f32.mrf.mxu0
    %1525 = vmatprep.mubr.bf16.mxu0 0
    %1526 = vmatmul.mubr.bf16.gmra.mxu0 %v1426
    %v1527 = vpop.f32.mrf.mxu0
    %v1528 = vadd.f32 %v1436, %v1527
    %v1529 = vpop.f32.mrf.mxu0
    %v1530 = vpop.f32.mrf.mxu0
    %v1531 = vadd.f32 %v1436, %v1530
    %v1532 = vpop.f32.mrf.mxu0
    %1533 = vmatprep.mubr.bf16.mxu0 0
    %1534 = vmatmul.mubr.bf16.gmra.mxu0 %v1427
    %v1535 = vpop.f32.mrf.mxu0
    %v1536 = vadd.f32 %v1436, %v1535
    %v1537 = vpop.f32.mrf.mxu0
    %v1538 = vpop.f32.mrf.mxu0
    %v1539 = vadd.f32 %v1436, %v1538
    %v1540 = vpop.f32.mrf.mxu0
    %1541 = vmatprep.mubr.bf16.mxu0 0
    %1542 = vmatmul.mubr.bf16.gmra.mxu0 %v1428
    %v1543 = vpop.f32.mrf.mxu0
    %v1544 = vadd.f32 %v1436, %v1543
    %v1545 = vpop.f32.mrf.mxu0
    %v1546 = vpop.f32.mrf.mxu0
    %v1547 = vadd.f32 %v1436, %v1546
    %v1548 = vpop.f32.mrf.mxu0
    %1549 = vmatprep.mubr.bf16.mxu0 0
    %1550 = vmatmul.mubr.bf16.gmra.mxu0 %v1429
    %v1551 = vpop.f32.mrf.mxu0
    %v1552 = vadd.f32 %v1436, %v1551
    %v1553 = vpop.f32.mrf.mxu0
    %v1554 = vpop.f32.mrf.mxu0
    %v1555 = vadd.f32 %v1436, %v1554
    %v1556 = vpop.f32.mrf.mxu0
    %1557 = vmatprep.mubr.bf16.mxu0 0
    %1558 = vmatmul.mubr.bf16.gmra.mxu0 %v1430
    %v1559 = vpop.f32.mrf.mxu0
    %v1560 = vadd.f32 %v1436, %v1559
    %v1561 = vpop.f32.mrf.mxu0
    %v1562 = vpop.f32.mrf.mxu0
    %v1563 = vadd.f32 %v1436, %v1562
    %v1564 = vpop.f32.mrf.mxu0
    %1565 = vmatprep.mubr.bf16.mxu0 0
    %1566 = vmatmul.mubr.bf16.gmra.mxu0 %v1431
    %v1567 = vpop.f32.mrf.mxu0
    %v1568 = vadd.f32 %v1436, %v1567
    %v1569 = vpop.f32.mrf.mxu0
    %v1570 = vpop.f32.mrf.mxu0
    %v1571 = vadd.f32 %v1436, %v1570
    %v1572 = vpop.f32.mrf.mxu0
    %1573 = vmatprep.mubr.bf16.mxu0 0
    %1574 = vmatmul.mubr.bf16.gmra.mxu0 %v1432
    %v1575 = vpop.f32.mrf.mxu0
    %v1576 = vadd.f32 %v1436, %v1575
    %v1577 = vpop.f32.mrf.mxu0
    %v1578 = vpop.f32.mrf.mxu0
    %v1579 = vadd.f32 %v1436, %v1578
    %v1580 = vpop.f32.mrf.mxu0
    %1581 = vdwg.mxu0
    %v1582 = vmax.f32 %v1520, 0.0
    %v1583 = vmax.f32 %v1523, 0.0
    %v1584 = vmax.f32 %v1528, 0.0
    %v1585 = vmax.f32 %v1531, 0.0
    %v1586 = vmax.f32 %v1536, 0.0
    %v1587 = vmax.f32 %v1539, 0.0
    %v1588 = vmax.f32 %v1544, 0.0
    %v1589 = vmax.f32 %v1547, 0.0
    %v1590 = vmax.f32 %v1552, 0.0
    %v1591 = vmax.f32 %v1555, 0.0
    %v1592 = vmax.f32 %v1560, 0.0
    %v1593 = vmax.f32 %v1563, 0.0
    %v1594 = vmax.f32 %v1568, 0.0
    %v1595 = vmax.f32 %v1571, 0.0
    %v1596 = vmax.f32 %v1576, 0.0
    %v1597 = vmax.f32 %v1579, 0.0
    %v1598 = vpack.c.bf16 %v1583, %v1582
    %v1599 = vpack.c.bf16 %v1585, %v1584
    %v1600 = vpack.c.bf16 %v1587, %v1586
    %v1601 = vpack.c.bf16 %v1589, %v1588
    %v1602 = vpack.c.bf16 %v1591, %v1590
    %v1603 = vpack.c.bf16 %v1593, %v1592
    %v1604 = vpack.c.bf16 %v1595, %v1594
    %v1605 = vpack.c.bf16 %v1597, %v1596
    %v1606 = vlaneseq
    %v1607 = vshrl.u32 %v1606, 7
    %v1608 = vsub.s32 1, %v1607
    %v1609 = vrot.slane %v1070, %v1608
    %v1626 = vunpack.c.l.b16 %v1053
    %v1627 = vunpack.c.l.b16 %v1054
    %v1628 = vunpack.c.l.b16 %v1055
    %v1629 = vunpack.c.l.b16 %v1056
    %v1630 = vunpack.c.l.b16 %v1057
    %v1631 = vunpack.c.l.b16 %v1058
    %v1632 = vunpack.c.l.b16 %v1059
    %v1633 = vunpack.c.l.b16 %v1060
    %v1634 = vunpack.c.l.b16 %v1061
    %v1635 = vunpack.c.l.b16 %v1062
    %v1636 = vunpack.c.l.b16 %v1063
    %v1637 = vunpack.c.l.b16 %v1064
    %v1638 = vunpack.c.l.b16 %v1065
    %v1639 = vunpack.c.l.b16 %v1066
    %v1640 = vunpack.c.l.b16 %v1067
    %v1641 = vunpack.c.l.b16 %v1068
    %v1642 = vpack.c.b16 %v1627, %v1626
    %v1643 = vpack.c.b16 %v1629, %v1628
    %v1644 = vpack.c.b16 %v1631, %v1630
    %v1645 = vpack.c.b16 %v1633, %v1632
    %v1646 = vpack.c.b16 %v1635, %v1634
    %v1647 = vpack.c.b16 %v1637, %v1636
    %v1648 = vpack.c.b16 %v1639, %v1638
    %v1649 = vpack.c.b16 %v1641, %v1640
    %1658 = vmatprep.subr.bf16.mxu0 0
    %1659 = vmatpush1.bf16.msra.mxu0 %v1649
    %1660 = vmatprep.subr.bf16.mxu0 0
    %1661 = vmatpush1.bf16.msra.mxu0 %v1648
    %1662 = vmatprep.subr.bf16.mxu0 0
    %1663 = vmatpush1.bf16.msra.mxu0 %v1647
    %1664 = vmatprep.subr.bf16.mxu0 0
    %1665 = vmatpush1.bf16.msra.mxu0 %v1646
    %1666 = vmatprep.subr.bf16.mxu0 0
    %1667 = vmatpush1.bf16.msra.mxu0 %v1645
    %1668 = vmatprep.subr.bf16.mxu0 0
    %1669 = vmatpush1.bf16.msra.mxu0 %v1644
    %1670 = vmatprep.subr.bf16.mxu0 0
    %1671 = vmatpush1.bf16.msra.mxu0 %v1643
    %1672 = vmatprep.subr.bf16.mxu0 0
    %1673 = vmatpush1.bf16.msra.mxu0 %v1642
    %1674 = vmatprep.subr.bf16.mxu0 0
    %1675 = vmatpush2.bf16.msra.mxu0 0
    %1676 = vmatprep.subr.bf16.mxu0 0
    %1677 = vmatpush2.bf16.msra.mxu0 0
    %1678 = vmatprep.subr.bf16.mxu0 0
    %1679 = vmatpush2.bf16.msra.mxu0 0
    %1680 = vmatprep.subr.bf16.mxu0 0
    %1681 = vmatpush2.bf16.msra.mxu0 0
    %1682 = vmatprep.subr.bf16.mxu0 0
    %1683 = vmatpush2.bf16.msra.mxu0 0
    %1684 = vmatprep.subr.bf16.mxu0 0
    %1685 = vmatpush2.bf16.msra.mxu0 0
    %1686 = vmatprep.subr.bf16.mxu0 0
    %1687 = vmatpush2.bf16.msra.mxu0 0
    %1688 = vmatprep.subr.bf16.mxu0 0
    %1689 = vmatpush2.bf16.msra.mxu0 0
    %1690 = vmatprep.mubr.bf16.mxu0 0
    %1691 = vmatmul.mubr.bf16.gmra.mxu0 %v1598
    %v1692 = vpop.f32.mrf.mxu0
    %v1693 = vadd.f32 %v1609, %v1692
    %v1694 = vpop.f32.mrf.mxu0
    %v1695 = vpop.f32.mrf.mxu0
    %v1696 = vadd.f32 %v1609, %v1695
    %v1697 = vpop.f32.mrf.mxu0
    %1698 = vmatprep.mubr.bf16.mxu0 0
    %1699 = vmatmul.mubr.bf16.gmra.mxu0 %v1599
    %v1700 = vpop.f32.mrf.mxu0
    %v1701 = vadd.f32 %v1609, %v1700
    %v1702 = vpop.f32.mrf.mxu0
    %v1703 = vpop.f32.mrf.mxu0
    %v1704 = vadd.f32 %v1609, %v1703
    %v1705 = vpop.f32.mrf.mxu0
    %1706 = vmatprep.mubr.bf16.mxu0 0
    %1707 = vmatmul.mubr.bf16.gmra.mxu0 %v1600
    %v1708 = vpop.f32.mrf.mxu0
    %v1709 = vadd.f32 %v1609, %v1708
    %v1710 = vpop.f32.mrf.mxu0
    %v1711 = vpop.f32.mrf.mxu0
    %v1712 = vadd.f32 %v1609, %v1711
    %v1713 = vpop.f32.mrf.mxu0
    %1714 = vmatprep.mubr.bf16.mxu0 0
    %1715 = vmatmul.mubr.bf16.gmra.mxu0 %v1601
    %v1716 = vpop.f32.mrf.mxu0
    %v1717 = vadd.f32 %v1609, %v1716
    %v1718 = vpop.f32.mrf.mxu0
    %v1719 = vpop.f32.mrf.mxu0
    %v1720 = vadd.f32 %v1609, %v1719
    %v1721 = vpop.f32.mrf.mxu0
    %1722 = vmatprep.mubr.bf16.mxu0 0
    %1723 = vmatmul.mubr.bf16.gmra.mxu0 %v1602
    %v1724 = vpop.f32.mrf.mxu0
    %v1725 = vadd.f32 %v1609, %v1724
    %v1726 = vpop.f32.mrf.mxu0
    %v1727 = vpop.f32.mrf.mxu0
    %v1728 = vadd.f32 %v1609, %v1727
    %v1729 = vpop.f32.mrf.mxu0
    %1730 = vmatprep.mubr.bf16.mxu0 0
    %1731 = vmatmul.mubr.bf16.gmra.mxu0 %v1603
    %v1732 = vpop.f32.mrf.mxu0
    %v1733 = vadd.f32 %v1609, %v1732
    %v1734 = vpop.f32.mrf.mxu0
    %v1735 = vpop.f32.mrf.mxu0
    %v1736 = vadd.f32 %v1609, %v1735
    %v1737 = vpop.f32.mrf.mxu0
    %1738 = vmatprep.mubr.bf16.mxu0 0
    %1739 = vmatmul.mubr.bf16.gmra.mxu0 %v1604
    %v1740 = vpop.f32.mrf.mxu0
    %v1741 = vadd.f32 %v1609, %v1740
    %v1742 = vpop.f32.mrf.mxu0
    %v1743 = vpop.f32.mrf.mxu0
    %v1744 = vadd.f32 %v1609, %v1743
    %v1745 = vpop.f32.mrf.mxu0
    %1746 = vmatprep.mubr.bf16.mxu0 0
    %1747 = vmatmul.mubr.bf16.gmra.mxu0 %v1605
    %v1748 = vpop.f32.mrf.mxu0
    %v1749 = vadd.f32 %v1609, %v1748
    %v1750 = vpop.f32.mrf.mxu0
    %v1751 = vpop.f32.mrf.mxu0
    %v1752 = vadd.f32 %v1609, %v1751
    %v1753 = vpop.f32.mrf.mxu0
    %1754 = vdwg.mxu0
    %v1755 = vlaneseq
    %v1756 = vshrl.u32 %v1755, 7
    %v1757 = vadd.s32 %v1756, 8
    %v1758 = vadd.s32 %v1756, 16
    %v1759 = vadd.s32 %v1756, 24
    %v1760 = vadd.s32 %v1756, 32
    %v1761 = vadd.s32 %v1756, 40
    %v1762 = vadd.s32 %v1756, 48
    %v1763 = vadd.s32 %v1756, 56
    %v1764 = vadd.s32 %v1756, 64
    %v1765 = vadd.s32 %v1756, 72
    %v1766 = vadd.s32 %v1756, 80
    %v1767 = vadd.s32 %v1756, 88
    %v1768 = vadd.s32 %v1756, 96
    %v1769 = vadd.s32 %v1756, 104
    %v1770 = vadd.s32 %v1756, 112
    %v1771 = vadd.s32 %v1756, 120
    %vm1772 = vcmp.lt.s32.totalorder %v1756, 16
    %vm1773 = vcmp.lt.s32.totalorder %v1757, 16
    %vm1774 = vcmp.lt.s32.totalorder %v1758, 16
    %vm1775 = vcmp.lt.s32.totalorder %v1759, 16
    %vm1776 = vcmp.lt.s32.totalorder %v1760, 16
    %vm1777 = vcmp.lt.s32.totalorder %v1761, 16
    %vm1778 = vcmp.lt.s32.totalorder %v1762, 16
    %vm1779 = vcmp.lt.s32.totalorder %v1763, 16
    %vm1780 = vcmp.lt.s32.totalorder %v1764, 16
    %vm1781 = vcmp.lt.s32.totalorder %v1765, 16
    %vm1782 = vcmp.lt.s32.totalorder %v1766, 16
    %vm1783 = vcmp.lt.s32.totalorder %v1767, 16
    %vm1784 = vcmp.lt.s32.totalorder %v1768, 16
    %vm1785 = vcmp.lt.s32.totalorder %v1769, 16
    %vm1786 = vcmp.lt.s32.totalorder %v1770, 16
    %vm1787 = vcmp.lt.s32.totalorder %v1771, 16
    %v1788 = vsel %vm1772, %v1693, 0.0
    %v1789 = vsel %vm1773, %v1696, 0.0
    %v1790 = vsel %vm1774, %v1701, 0.0
    %v1791 = vsel %vm1775, %v1704, 0.0
    %v1792 = vsel %vm1776, %v1709, 0.0
    %v1793 = vsel %vm1777, %v1712, 0.0
    %v1794 = vsel %vm1778, %v1717, 0.0
    %v1795 = vsel %vm1779, %v1720, 0.0
    %v1796 = vsel %vm1780, %v1725, 0.0
    %v1797 = vsel %vm1781, %v1728, 0.0
    %v1798 = vsel %vm1782, %v1733, 0.0
    %v1799 = vsel %vm1783, %v1736, 0.0
    %v1800 = vsel %vm1784, %v1741, 0.0
    %v1801 = vsel %vm1785, %v1744, 0.0
    %v1802 = vsel %vm1786, %v1749, 0.0
    %v1803 = vsel %vm1787, %v1752, 0.0
    %v1804 = vadd.f32 %v1788, %v1789
    %v1805 = vadd.f32 %v1804, %v1790
    %v1806 = vadd.f32 %v1805, %v1791
    %v1807 = vadd.f32 %v1806, %v1792
    %v1808 = vadd.f32 %v1807, %v1793
    %v1809 = vadd.f32 %v1808, %v1794
    %v1810 = vadd.f32 %v1809, %v1795
    %v1811 = vadd.f32 %v1810, %v1796
    %v1812 = vadd.f32 %v1811, %v1797
    %v1813 = vadd.f32 %v1812, %v1798
    %v1814 = vadd.f32 %v1813, %v1799
    %v1815 = vadd.f32 %v1814, %v1800
    %v1816 = vadd.f32 %v1815, %v1801
    %v1817 = vadd.f32 %v1816, %v1802
    %v1818 = vadd.f32 %v1817, %v1803
    %v1819 = vrot.slane %v1818, 4
    %v1820 = vadd.f32 %v1818, %v1819
    %v1821 = vrot.slane %v1820, 2
    %v1822 = vadd.f32 %v1820, %v1821
    %v1823 = vrot.slane %v1822, 1
    %v1824 = vadd.f32 %v1822, %v1823
    %v1825 = vmul.f32 %v1824, 0.0625
    %v1826 = vmul.f32 %v1788, %v1693
    %v1827 = vmul.f32 %v1789, %v1696
    %v1828 = vmul.f32 %v1790, %v1701
    %v1829 = vmul.f32 %v1791, %v1704
    %v1830 = vmul.f32 %v1792, %v1709
    %v1831 = vmul.f32 %v1793, %v1712
    %v1832 = vmul.f32 %v1794, %v1717
    %v1833 = vmul.f32 %v1795, %v1720
    %v1834 = vmul.f32 %v1796, %v1725
    %v1835 = vmul.f32 %v1797, %v1728
    %v1836 = vmul.f32 %v1798, %v1733
    %v1837 = vmul.f32 %v1799, %v1736
    %v1838 = vmul.f32 %v1800, %v1741
    %v1839 = vmul.f32 %v1801, %v1744
    %v1840 = vmul.f32 %v1802, %v1749
    %v1841 = vmul.f32 %v1803, %v1752
    %v1842 = vadd.f32 %v1826, %v1827
    %v1843 = vadd.f32 %v1842, %v1828
    %v1844 = vadd.f32 %v1843, %v1829
    %v1845 = vadd.f32 %v1844, %v1830
    %v1846 = vadd.f32 %v1845, %v1831
    %v1847 = vadd.f32 %v1846, %v1832
    %v1848 = vadd.f32 %v1847, %v1833
    %v1849 = vadd.f32 %v1848, %v1834
    %v1850 = vadd.f32 %v1849, %v1835
    %v1851 = vadd.f32 %v1850, %v1836
    %v1852 = vadd.f32 %v1851, %v1837
    %v1853 = vadd.f32 %v1852, %v1838
    %v1854 = vadd.f32 %v1853, %v1839
    %v1855 = vadd.f32 %v1854, %v1840
    %v1856 = vadd.f32 %v1855, %v1841
    %v1857 = vrot.slane %v1856, 4
    %v1858 = vadd.f32 %v1856, %v1857
    %v1859 = vrot.slane %v1858, 2
    %v1860 = vadd.f32 %v1858, %v1859
    %v1861 = vrot.slane %v1860, 1
    %v1862 = vadd.f32 %v1860, %v1861
    %v1863 = vmul.f32 %v1862, 0.0625
    %v1864 = vmul.f32 %v1825, %v1825
    %v1865 = vsub.f32 %v1863, %v1864
    %v1866 = vmax.f32 %v1865, 0.0
    %v1867 = vadd.f32 %v1866, 1e-05
    %v1868 = vrsqrt.pop %v1867
    %v1869 = vmul.f32 %v1868, %v1070
    %v1870 = vpack.c.bf16 %v1696, %v1693
    %v1871 = vpack.c.bf16 %v1704, %v1701
    %v1872 = vpack.c.bf16 %v1712, %v1709
    %v1873 = vpack.c.bf16 %v1720, %v1717
    %v1874 = vpack.c.bf16 %v1728, %v1725
    %v1875 = vpack.c.bf16 %v1736, %v1733
    %v1876 = vpack.c.bf16 %v1744, %v1741
    %v1877 = vpack.c.bf16 %v1752, %v1749
    %1878 = vmatprep.subr.bf16.mxu0 0
    %1879 = vmatpush1.bf16.msra.mxu0 %v1877
    %1880 = vmatprep.subr.bf16.mxu0 0
    %1881 = vmatpush1.bf16.msra.mxu0 %v1876
    %1882 = vmatprep.subr.bf16.mxu0 0
    %1883 = vmatpush1.bf16.msra.mxu0 %v1875
    %1884 = vmatprep.subr.bf16.mxu0 0
    %1885 = vmatpush1.bf16.msra.mxu0 %v1874
    %1886 = vmatprep.subr.bf16.mxu0 0
    %1887 = vmatpush1.bf16.msra.mxu0 %v1873
    %1888 = vmatprep.subr.bf16.mxu0 0
    %1889 = vmatpush1.bf16.msra.mxu0 %v1872
    %1890 = vmatprep.subr.bf16.mxu0 0
    %1891 = vmatpush1.bf16.msra.mxu0 %v1871
    %1892 = vmatprep.subr.bf16.mxu0 0
    %1893 = vmatpush1.bf16.msra.mxu0 %v1870
    %1894 = vmatprep.subr.bf16.mxu0 0
    %1895 = vmatpush2.bf16.msra.mxu0 0
    %1896 = vmatprep.subr.bf16.mxu0 0
    %1897 = vmatpush2.bf16.msra.mxu0 0
    %1898 = vmatprep.subr.bf16.mxu0 0
    %1899 = vmatpush2.bf16.msra.mxu0 0
    %1900 = vmatprep.subr.bf16.mxu0 0
    %1901 = vmatpush2.bf16.msra.mxu0 0
    %1902 = vmatprep.subr.bf16.mxu0 0
    %1903 = vmatpush2.bf16.msra.mxu0 0
    %1904 = vmatprep.subr.bf16.mxu0 0
    %1905 = vmatpush2.bf16.msra.mxu0 0
    %1906 = vmatprep.subr.bf16.mxu0 0
    %1907 = vmatpush2.bf16.msra.mxu0 0
    %1908 = vmatprep.subr.bf16.mxu0 0
    %1909 = vmatpush2.bf16.msra.mxu0 0
    %1910 = vmatprep.mubr.bf16.mxu0 0
    %1911 = vmatmul.mubr.bf16.gmra.mxu0 %v56
    %v1912 = vpop.f32.mrf.mxu0
    %v1913 = vadd.f32 0.0, %v1912
    %v1914 = vpop.f32.mrf.mxu0
    %v1915 = vpop.f32.mrf.mxu0
    %v1916 = vpop.f32.mrf.mxu0
    %1917 = vdwg.mxu0
    %v1918 = vsub.f32 %v1913, %v1825
    %v1919 = vlaneseq
    %v1920 = vshrl.u32 %v1919, 7
    %v1921 = vsub.s32 2, %v1920
    %v1922 = vrot.slane %v1869, %v1921
    %v1923 = vmul.f32 %v1918, %v1922
    %v1924 = vlaneseq
    %v1925 = vshrl.u32 %v1924, 7
    %v1926 = vsub.s32 3, %v1925
    %v1927 = vrot.slane %v1070, %v1926
    %v1928 = vadd.f32 %v1923, %v1927
    %v1929 = vld [vmem:[#allocation2 + $0x4b0] sm:$0xf]
    %v1930 = vld [vmem:[#allocation2 + $0x4b4] sm:$0xf]
    %v1931 = vld [vmem:[#allocation2 + $0x4b8] sm:$0xf]
    %v1932 = vld [vmem:[#allocation2 + $0x4bc] sm:$0xf]
    %v1933 = vld [vmem:[#allocation2 + $0x4c0] sm:$0xf]
    %v1934 = vld [vmem:[#allocation2 + $0x4c4] sm:$0xf]
    %v1935 = vld [vmem:[#allocation2 + $0x4c8] sm:$0xf]
    %v1936 = vld [vmem:[#allocation2 + $0x4cc] sm:$0xf]
    %v1937 = vld [vmem:[#allocation2 + $0x4d0] sm:$0xf]
    %v1938 = vld [vmem:[#allocation2 + $0x4d4] sm:$0xf]
    %v1939 = vld [vmem:[#allocation2 + $0x4d8] sm:$0xf]
    %v1940 = vld [vmem:[#allocation2 + $0x4dc] sm:$0xf]
    %v1941 = vld [vmem:[#allocation2 + $0x4e0] sm:$0xf]
    %v1942 = vld [vmem:[#allocation2 + $0x4e4] sm:$0xf]
    %v1943 = vld [vmem:[#allocation2 + $0x4e8] sm:$0xf]
    %v1944 = vld [vmem:[#allocation2 + $0x4ec] sm:$0xf]
    %v1945 = vld [vmem:[#allocation2 + $0x4f0] sm:$0xf]
    %v1946 = vld [vmem:[#allocation2 + $0x4f4] sm:$0xf]
    %v1947 = vld [vmem:[#allocation2 + $0x4f8] sm:$0xf]
    %v1948 = vld [vmem:[#allocation2 + $0x4fc] sm:$0xf]
    %v1949 = vld [vmem:[#allocation2 + $0x500] sm:$0xf]
    %v1950 = vld [vmem:[#allocation2 + $0x504] sm:$0xf]
    %v1951 = vld [vmem:[#allocation2 + $0x508] sm:$0xf]
    %v1952 = vld [vmem:[#allocation2 + $0x50c] sm:$0xf]
    %v1953 = vld [vmem:[#allocation2 + $0x510] sm:$0xf]
    %v1954 = vld [vmem:[#allocation2 + $0x514] sm:$0xf]
    %v1955 = vld [vmem:[#allocation2 + $0x518] sm:$0xf]
    %v1956 = vld [vmem:[#allocation2 + $0x51c] sm:$0xf]
    %v1957 = vld [vmem:[#allocation2 + $0x520] sm:$0xf]
    %v1958 = vld [vmem:[#allocation2 + $0x524] sm:$0xf]
    %v1959 = vld [vmem:[#allocation2 + $0x528] sm:$0xf]
    %v1960 = vld [vmem:[#allocation2 + $0x52c] sm:$0xf]
    %v1961 = vld [vmem:[#allocation2 + $0x530] sm:$0xf]
    %v1962 = vld [vmem:[#allocation2 + $0x534] sm:$0xf]
    %v1963 = vld [vmem:[#allocation2 + $0x538] sm:$0xf]
    %v1964 = vld [vmem:[#allocation2 + $0x53c] sm:$0xf]
    %v1965 = vld [vmem:[#allocation2 + $0x540] sm:$0xf]
    %v1966 = vld [vmem:[#allocation2 + $0x544] sm:$0xf]
    %v1967 = vld [vmem:[#allocation2 + $0x548] sm:$0xf]
    %v1968 = vld [vmem:[#allocation2 + $0x54c] sm:$0xf]
    %v1969 = vld [vmem:[#allocation2 + $0x550] sm:$0xf]
    %v1970 = vld [vmem:[#allocation2 + $0x554] sm:$0xf]
    %v1971 = vld [vmem:[#allocation2 + $0x558] sm:$0xf]
    %v1972 = vld [vmem:[#allocation2 + $0x55c] sm:$0xf]
    %v1973 = vld [vmem:[#allocation2 + $0x560] sm:$0xf]
    %v1974 = vld [vmem:[#allocation2 + $0x564] sm:$0xf]
    %v1975 = vld [vmem:[#allocation2 + $0x568] sm:$0xf]
    %v1976 = vld [vmem:[#allocation2 + $0x56c] sm:$0xf]
    %v1977 = vld [vmem:[#allocation2 + $0x570] sm:$0xf]
    %v1978 = vunpack.c.l.bf16 %v1977
    %v1979 = vpack.c.bf16 %v1928, %v1928
    %v1980 = vlaneseq
    %v1981 = vshrl.u32 %v1980, 7
    %v1982 = vsub.s32 0, %v1981
    %v1983 = vrot.slane %v1978, %v1982
    %v2000 = vunpack.c.l.b16 %v1929
    %v2001 = vunpack.c.l.b16 %v1930
    %v2002 = vunpack.c.l.b16 %v1931
    %v2003 = vunpack.c.l.b16 %v1932
    %v2004 = vunpack.c.l.b16 %v1933
    %v2005 = vunpack.c.l.b16 %v1934
    %v2006 = vunpack.c.l.b16 %v1935
    %v2007 = vunpack.c.l.b16 %v1936
    %v2008 = vunpack.c.l.b16 %v1937
    %v2009 = vunpack.c.l.b16 %v1938
    %v2010 = vunpack.c.l.b16 %v1939
    %v2011 = vunpack.c.l.b16 %v1940
    %v2012 = vunpack.c.l.b16 %v1941
    %v2013 = vunpack.c.l.b16 %v1942
    %v2014 = vunpack.c.l.b16 %v1943
    %v2015 = vunpack.c.l.b16 %v1944
    %v2016 = vpack.c.b16 %v2001, %v2000
    %v2017 = vpack.c.b16 %v2003, %v2002
    %v2018 = vpack.c.b16 %v2005, %v2004
    %v2019 = vpack.c.b16 %v2007, %v2006
    %v2020 = vpack.c.b16 %v2009, %v2008
    %v2021 = vpack.c.b16 %v2011, %v2010
    %v2022 = vpack.c.b16 %v2013, %v2012
    %v2023 = vpack.c.b16 %v2015, %v2014
    %2032 = vmatprep.subr.bf16.mxu0 0
    %2033 = vmatpush1.bf16.msra.mxu0 %v2023
    %2034 = vmatprep.subr.bf16.mxu0 0
    %2035 = vmatpush1.bf16.msra.mxu0 %v2022
    %2036 = vmatprep.subr.bf16.mxu0 0
    %2037 = vmatpush1.bf16.msra.mxu0 %v2021
    %2038 = vmatprep.subr.bf16.mxu0 0
    %2039 = vmatpush1.bf16.msra.mxu0 %v2020
    %2040 = vmatprep.subr.bf16.mxu0 0
    %2041 = vmatpush1.bf16.msra.mxu0 %v2019
    %2042 = vmatprep.subr.bf16.mxu0 0
    %2043 = vmatpush1.bf16.msra.mxu0 %v2018
    %2044 = vmatprep.subr.bf16.mxu0 0
    %2045 = vmatpush1.bf16.msra.mxu0 %v2017
    %2046 = vmatprep.subr.bf16.mxu0 0
    %2047 = vmatpush1.bf16.msra.mxu0 %v2016
    %2048 = vmatprep.subr.bf16.mxu0 0
    %2049 = vmatpush2.bf16.msra.mxu0 0
    %2050 = vmatprep.subr.bf16.mxu0 0
    %2051 = vmatpush2.bf16.msra.mxu0 0
    %2052 = vmatprep.subr.bf16.mxu0 0
    %2053 = vmatpush2.bf16.msra.mxu0 0
    %2054 = vmatprep.subr.bf16.mxu0 0
    %2055 = vmatpush2.bf16.msra.mxu0 0
    %2056 = vmatprep.subr.bf16.mxu0 0
    %2057 = vmatpush2.bf16.msra.mxu0 0
    %2058 = vmatprep.subr.bf16.mxu0 0
    %2059 = vmatpush2.bf16.msra.mxu0 0
    %2060 = vmatprep.subr.bf16.mxu0 0
    %2061 = vmatpush2.bf16.msra.mxu0 0
    %2062 = vmatprep.subr.bf16.mxu0 0
    %2063 = vmatpush2.bf16.msra.mxu0 0
    %2064 = vmatprep.mubr.bf16.mxu0 0
    %2065 = vmatmul.mubr.bf16.gmra.mxu0 %v1979
    %v2066 = vpop.f32.mrf.mxu0
    %v2067 = vadd.f32 %v1983, %v2066
    %v2068 = vpop.f32.mrf.mxu0
    %v2069 = vpop.f32.mrf.mxu0
    %v2070 = vpop.f32.mrf.mxu0
    %2071 = vdwg.mxu0
    %v2072 = vpack.c.bf16 %v2067, %v2067
    %v2073 = vlaneseq
    %v2074 = vshrl.u32 %v2073, 7
    %v2075 = vsub.s32 1, %v2074
    %v2076 = vrot.slane %v1978, %v2075
    %v2093 = vunpack.c.l.b16 %v1945
    %v2094 = vunpack.c.l.b16 %v1946
    %v2095 = vunpack.c.l.b16 %v1947
    %v2096 = vunpack.c.l.b16 %v1948
    %v2097 = vunpack.c.l.b16 %v1949
    %v2098 = vunpack.c.l.b16 %v1950
    %v2099 = vunpack.c.l.b16 %v1951
    %v2100 = vunpack.c.l.b16 %v1952
    %v2101 = vunpack.c.l.b16 %v1953
    %v2102 = vunpack.c.l.b16 %v1954
    %v2103 = vunpack.c.l.b16 %v1955
    %v2104 = vunpack.c.l.b16 %v1956
    %v2105 = vunpack.c.l.b16 %v1957
    %v2106 = vunpack.c.l.b16 %v1958
    %v2107 = vunpack.c.l.b16 %v1959
    %v2108 = vunpack.c.l.b16 %v1960
    %v2109 = vpack.c.b16 %v2094, %v2093
    %v2110 = vpack.c.b16 %v2096, %v2095
    %v2111 = vpack.c.b16 %v2098, %v2097
    %v2112 = vpack.c.b16 %v2100, %v2099
    %v2113 = vpack.c.b16 %v2102, %v2101
    %v2114 = vpack.c.b16 %v2104, %v2103
    %v2115 = vpack.c.b16 %v2106, %v2105
    %v2116 = vpack.c.b16 %v2108, %v2107
    %2125 = vmatprep.subr.bf16.mxu0 0
    %2126 = vmatpush1.bf16.msra.mxu0 %v2116
    %2127 = vmatprep.subr.bf16.mxu0 0
    %2128 = vmatpush1.bf16.msra.mxu0 %v2115
    %2129 = vmatprep.subr.bf16.mxu0 0
    %2130 = vmatpush1.bf16.msra.mxu0 %v2114
    %2131 = vmatprep.subr.bf16.mxu0 0
    %2132 = vmatpush1.bf16.msra.mxu0 %v2113
    %2133 = vmatprep.subr.bf16.mxu0 0
    %2134 = vmatpush1.bf16.msra.mxu0 %v2112
    %2135 = vmatprep.subr.bf16.mxu0 0
    %2136 = vmatpush1.bf16.msra.mxu0 %v2111
    %2137 = vmatprep.subr.bf16.mxu0 0
    %2138 = vmatpush1.bf16.msra.mxu0 %v2110
    %2139 = vmatprep.subr.bf16.mxu0 0
    %2140 = vmatpush1.bf16.msra.mxu0 %v2109
    %2141 = vmatprep.subr.bf16.mxu0 0
    %2142 = vmatpush2.bf16.msra.mxu0 0
    %2143 = vmatprep.subr.bf16.mxu0 0
    %2144 = vmatpush2.bf16.msra.mxu0 0
    %2145 = vmatprep.subr.bf16.mxu0 0
    %2146 = vmatpush2.bf16.msra.mxu0 0
    %2147 = vmatprep.subr.bf16.mxu0 0
    %2148 = vmatpush2.bf16.msra.mxu0 0
    %2149 = vmatprep.subr.bf16.mxu0 0
    %2150 = vmatpush2.bf16.msra.mxu0 0
    %2151 = vmatprep.subr.bf16.mxu0 0
    %2152 = vmatpush2.bf16.msra.mxu0 0
    %2153 = vmatprep.subr.bf16.mxu0 0
    %2154 = vmatpush2.bf16.msra.mxu0 0
    %2155 = vmatprep.subr.bf16.mxu0 0
    %2156 = vmatpush2.bf16.msra.mxu0 0
    %2157 = vmatprep.mubr.bf16.mxu0 0
    %2158 = vmatmul.mubr.bf16.gmra.mxu0 %v2072
    %v2159 = vpop.f32.mrf.mxu0
    %v2160 = vadd.f32 %v2076, %v2159
    %v2161 = vpop.f32.mrf.mxu0
    %v2162 = vpop.f32.mrf.mxu0
    %v2163 = vpop.f32.mrf.mxu0
    %2164 = vdwg.mxu0
    %v2165 = vmax.f32 %v2160, 0.0
    %v2166 = vpack.c.bf16 %v2165, %v2165
    %v2167 = vlaneseq
    %v2168 = vshrl.u32 %v2167, 7
    %v2169 = vsub.s32 2, %v2168
    %v2170 = vrot.slane %v1978, %v2169
    %v2187 = vunpack.c.l.b16 %v1961
    %v2188 = vunpack.c.l.b16 %v1962
    %v2189 = vunpack.c.l.b16 %v1963
    %v2190 = vunpack.c.l.b16 %v1964
    %v2191 = vunpack.c.l.b16 %v1965
    %v2192 = vunpack.c.l.b16 %v1966
    %v2193 = vunpack.c.l.b16 %v1967
    %v2194 = vunpack.c.l.b16 %v1968
    %v2195 = vunpack.c.l.b16 %v1969
    %v2196 = vunpack.c.l.b16 %v1970
    %v2197 = vunpack.c.l.b16 %v1971
    %v2198 = vunpack.c.l.b16 %v1972
    %v2199 = vunpack.c.l.b16 %v1973
    %v2200 = vunpack.c.l.b16 %v1974
    %v2201 = vunpack.c.l.b16 %v1975
    %v2202 = vunpack.c.l.b16 %v1976
    %v2203 = vpack.c.b16 %v2188, %v2187
    %v2204 = vpack.c.b16 %v2190, %v2189
    %v2205 = vpack.c.b16 %v2192, %v2191
    %v2206 = vpack.c.b16 %v2194, %v2193
    %v2207 = vpack.c.b16 %v2196, %v2195
    %v2208 = vpack.c.b16 %v2198, %v2197
    %v2209 = vpack.c.b16 %v2200, %v2199
    %v2210 = vpack.c.b16 %v2202, %v2201
    %2219 = vmatprep.subr.bf16.mxu0 0
    %2220 = vmatpush1.bf16.msra.mxu0 %v2210
    %2221 = vmatprep.subr.bf16.mxu0 0
    %2222 = vmatpush1.bf16.msra.mxu0 %v2209
    %2223 = vmatprep.subr.bf16.mxu0 0
    %2224 = vmatpush1.bf16.msra.mxu0 %v2208
    %2225 = vmatprep.subr.bf16.mxu0 0
    %2226 = vmatpush1.bf16.msra.mxu0 %v2207
    %2227 = vmatprep.subr.bf16.mxu0 0
    %2228 = vmatpush1.bf16.msra.mxu0 %v2206
    %2229 = vmatprep.subr.bf16.mxu0 0
    %2230 = vmatpush1.bf16.msra.mxu0 %v2205
    %2231 = vmatprep.subr.bf16.mxu0 0
    %2232 = vmatpush1.bf16.msra.mxu0 %v2204
    %2233 = vmatprep.subr.bf16.mxu0 0
    %2234 = vmatpush1.bf16.msra.mxu0 %v2203
    %2235 = vmatprep.subr.bf16.mxu0 0
    %2236 = vmatpush2.bf16.msra.mxu0 0
    %2237 = vmatprep.subr.bf16.mxu0 0
    %2238 = vmatpush2.bf16.msra.mxu0 0
    %2239 = vmatprep.subr.bf16.mxu0 0
    %2240 = vmatpush2.bf16.msra.mxu0 0
    %2241 = vmatprep.subr.bf16.mxu0 0
    %2242 = vmatpush2.bf16.msra.mxu0 0
    %2243 = vmatprep.subr.bf16.mxu0 0
    %2244 = vmatpush2.bf16.msra.mxu0 0
    %2245 = vmatprep.subr.bf16.mxu0 0
    %2246 = vmatpush2.bf16.msra.mxu0 0
    %2247 = vmatprep.subr.bf16.mxu0 0
    %2248 = vmatpush2.bf16.msra.mxu0 0
    %2249 = vmatprep.subr.bf16.mxu0 0
    %2250 = vmatpush2.bf16.msra.mxu0 0
    %2251 = vmatprep.mubr.bf16.mxu0 0
    %2252 = vmatmul.mubr.bf16.gmra.mxu0 %v2166
    %v2253 = vpop.f32.mrf.mxu0
    %v2254 = vadd.f32 %v2170, %v2253
    %v2255 = vpop.f32.mrf.mxu0
    %v2256 = vpop.f32.mrf.mxu0
    %v2257 = vpop.f32.mrf.mxu0
    %2258 = vdwg.mxu0
    %2259 = vst [vmem:[#allocation5] sm:$0xff] %v2067
    %2260 = vst [vmem:[#allocation5 + $0x8] sm:$0xff] %v2254
    // Predicated region
    $region17: #{tpu_custom_call.1} parent=1 // pred_check
      _
    $region18: #{tpu_custom_call.1} parent=1 // pred_check_branch
      %2262 = sbr.rel (0) target = $region20
    $region19: #{tpu_custom_call.1} parent=1 // pred_region
      %s2264 = ssub.s32 256, 256
      %2265 = vsyncadd [#allocation4], %s2264
      %s2266 = sshll.u32 [#allocation5], 4
      %s2267 = int_to_ptr.vmem [resolvable:$true] %s2266
      %2272 = dma.vmem_to_hbm [thread:$0]  %s2267, 256, %s1, [#allocation4], 128, 128, 8
    $region20: #{tpu_custom_call.1} parent=1 // pred_fallthru
      _
    // Predicated region
    $region21: #{tpu_custom_call.1} parent=1 // pred_check
      _
    $region22: #{tpu_custom_call.1} parent=1 // pred_check_branch
      %2274 = sbr.rel (0) target = $region24
    $region23: #{tpu_custom_call.1} parent=1 // pred_region
      %2275 = dma.done [#allocation4], 256
    $region24: #{tpu_custom_call.1} parent=1 // pred_fallthru
      _
    %2276 = vsyncpa [#allocation3], 1
    %2277 = vsyncpa [#allocation4], 1

</llo_original>
